<compile_context>
chip_gen: v6e
topology: v6e:2x2x1
jax: 0.10.0
libtpu: 0.0.40
codegen_flags: <defaults>
</compile_context>

<pallas_src>
import functools

import jax
import jax.numpy as jnp
import numpy as np
from jax.experimental import pallas as pl
from jax.experimental.pallas import tpu as pltpu

EPS = 1e-5
VMEM_LIMIT = 48 * 1024 * 1024   # explicit scoped-VMEM cap (v7x physical VMEM is 64 MiB)


# --------------------------------------------------------------------------- kernels
def _conv1_kernel(*refs, has_proj):
    """1x1 conv (+ fused residual 1x1 projection) + one-pass BN1 sum/sumsq.

    inputs : x (TR, W*Ci) f32, w (W*Ci, W*Ch [+ W*Co]) bf16, [br (1, W*Co) f32]
    outputs: z1 (TR, W*Ch) f32, [res (TR, W*Co) f32], stats1 (2, W*Ch) f32 (resident)
    """
    if has_proj:
        x_ref, w_ref, br_ref, z1_ref, res_ref, stats_ref = refs
    else:
        x_ref, w_ref, z1_ref, stats_ref = refs

    i = pl.program_id(0)
    wch = z1_ref.shape[-1]

    # single bf16 MXU matmul over K = W*Ci (f32 accumulation)
    y = jnp.dot(x_ref[...].astype(jnp.bfloat16), w_ref[...],
                preferred_element_type=jnp.float32)
    z1 = y[:, :wch]
    z1_ref[...] = z1
    if has_proj:
        res_ref[...] = y[:, wch:] + br_ref[...]

    # one-pass BN stats (sum, sum-of-squares) accumulated into a resident output
    # block across the ("arbitrary") row-tile axis.
    st = jnp.concatenate(
        [jnp.sum(z1, axis=0, keepdims=True),
         jnp.sum(z1 * z1, axis=0, keepdims=True)], axis=0)

    @pl.when(i == 0)
    def _init():
        stats_ref[...] = jnp.zeros_like(stats_ref)

    stats_ref[...] += st


def _conv2_kernel(z1_ref, a1_ref, w2_ref, z2_ref, stats_ref):
    """BN1 affine + SiLU + 3x3 conv (banded block-Toeplitz matmuls), one image/step.

    inputs : z1 (1, H, W*Ch) f32, a1 (2, W*Ch) f32 [scale; shift],
             w2 (3, W*Ch, W*Co) bf16 (one banded matrix per kernel row)
    outputs: z2 (1, H, W*Co) f32, stats2 (2, W*Co) f32 (resident)
    """
    # NOTE: for very large H * W*Ch, tile H with a 1-row halo instead of whole images.
    n = pl.program_id(0)
    wch = z1_ref.shape[-1]

    z1 = z1_ref[0]                                        # (H, W*Ch), lane-dense
    y1 = z1 * a1_ref[0:1, :] + a1_ref[1:2, :]             # BN1 affine (f32)
    y1 = y1 * jax.nn.sigmoid(y1)                          # SiLU (f32, EUP)

    zero_row = jnp.zeros((1, wch), jnp.float32)
    up = jnp.concatenate([zero_row, y1[:-1, :]], axis=0)  # row h sees y1[h-1]
    dn = jnp.concatenate([y1[1:, :], zero_row], axis=0)   # row h sees y1[h+1]

    # 3x3 conv = 3 matmuls with K = W*Ch; W-direction padding lives in the band
    # structure of w2, so no padded scratch and no full-buffer zeroing is needed.
    acc = jnp.dot(up.astype(jnp.bfloat16), w2_ref[0], preferred_element_type=jnp.float32)
    acc = acc + jnp.dot(y1.astype(jnp.bfloat16), w2_ref[1], preferred_element_type=jnp.float32)
    acc = acc + jnp.dot(dn.astype(jnp.bfloat16), w2_ref[2], preferred_element_type=jnp.float32)

    z2_ref[0] = acc                                       # (H, W*Co), unmasked stores

    st = jnp.concatenate(
        [jnp.sum(acc, axis=0, keepdims=True),
         jnp.sum(acc * acc, axis=0, keepdims=True)], axis=0)

    @pl.when(n == 0)
    def _init():
        stats_ref[...] = jnp.zeros_like(stats_ref)

    stats_ref[...] += st


def _bn2_silu_add_kernel(z2_ref, res_ref, a2_ref, out_ref):
    """BN2 affine + SiLU + residual add: pure lane-dense elementwise tile ("parallel")."""
    y2 = z2_ref[...] * a2_ref[0:1, :] + a2_ref[1:2, :]
    y2 = y2 * jax.nn.sigmoid(y2)
    out_ref[...] = (res_ref[...] + y2).astype(out_ref.dtype)


# ------------------------------------------------------------------- weight helpers
def _block_diag(w, width):
    """(Ci, Cc) -> (width*Ci, width*Cc) block-diagonal: 1x1 conv over a (w, c) slab."""
    ci, cc = w.shape
    m = jnp.zeros((width * ci, width * cc), w.dtype)
    for k in range(width):
        m = m.at[k * ci:(k + 1) * ci, k * cc:(k + 1) * cc].set(w)
    return m


def _banded(w_row, width):
    """(3, Ch, Co) -> (width*Ch, width*Co) banded block-Toeplitz matrix applying the
    three W-direction taps of one 3x3-kernel row (zero padding folded into the band)."""
    ch, co = w_row.shape[1], w_row.shape[2]
    m = jnp.zeros((width * ch, width * co), w_row.dtype)
    for wo in range(width):
        for kw in range(3):
            wi = wo + kw - 1
            if 0 <= wi < width:
                m = m.at[wi * ch:(wi + 1) * ch, wo * co:(wo + 1) * co].set(w_row[kw])
    return m


def _bn_affine(stats, count, gamma, beta, width):
    """Finalize BN from accumulated (2, width*C) [sum; sumsq] -> tiled (2, width*C)
    [scale; shift] for the lane-dense layout.  Tiny per-channel math, done in plain
    XLA between pallas_calls (hoisted out of all kernel loops)."""
    c = gamma.size
    s = stats.reshape(2, width, c).sum(axis=1)            # reduce the W replicas
    mean = s[0] / count
    var = s[1] / count - mean * mean                      # biased variance (training BN)
    scale = gamma.reshape(-1) * jax.lax.rsqrt(var + EPS)
    shift = beta.reshape(-1) - mean * scale
    return jnp.stack([jnp.tile(scale, width), jnp.tile(shift, width)])


# ------------------------------------------------------------------------- wrapper
def bottleneck_forward(x_nchw, params):
    """x_nchw: (N, d_i, H, W) -> (N, d_o, H, W); matches the PyTorch module
    in training mode (BatchNorm batch statistics), groups=1."""
    # TODO(synk): grouped conv (group > 1) is not implemented; module default g=1.
    w1, b1, g1, be1, w2, b2, g2, be2, wr, br = params
    del b1, b2      # conv bias feeding a training-mode BN is cancelled by the mean

    N, Ci, H, W = x_nchw.shape
    Ch = w1.shape[1]
    Co = w2.shape[3]
    has_proj = Ci != Co
    wci, wch, wco = W * Ci, W * Ch, W * Co
    rows = N * H
    tr = 8 if rows % 8 == 0 else rows   # demo row tile; use 128-512 rows at real shapes
    count = float(N * H * W)

    # TODO(synk): keep activations NHWC end-to-end to drop these wrapper transposes
    # (each is an extra HBM round trip of the activation tensor).
    x2d = jnp.transpose(x_nchw, (0, 2, 3, 1)).reshape(rows, wci)

    # ---- weight preprocessing (tiny, done once) ----
    w1_bd = _block_diag(w1, W)
    if has_proj:
        wcat = jnp.concatenate([w1_bd, _block_diag(wr, W)], axis=1).astype(jnp.bfloat16)
        br_t = jnp.tile(br.reshape(-1), W).reshape(1, wco).astype(jnp.float32)
    else:   # identity residual: wr/br are never touched or DMA'd
        wcat = w1_bd.astype(jnp.bfloat16)
    w2_bd = jnp.stack([_banded(w2[kh], W) for kh in range(3)]).astype(jnp.bfloat16)

    # ---- stage 1: 1x1 conv (+ fused residual projection) + BN1 stats ----
    in_arrays = [x2d, wcat]
    in_specs = [pl.BlockSpec((tr, wci), lambda i: (i, 0)),
                pl.BlockSpec(wcat.shape, lambda i: (0, 0))]
    out_shape = [jax.ShapeDtypeStruct((rows, wch), jnp.float32)]
    out_specs = [pl.BlockSpec((tr, wch), lambda i: (i, 0))]
    if has_proj:
        in_arrays.append(br_t)
        in_specs.append(pl.BlockSpec((1, wco), lambda i: (0, 0)))
        out_shape.append(jax.ShapeDtypeStruct((rows, wco), jnp.float32))
        out_specs.append(pl.BlockSpec((tr, wco), lambda i: (i, 0)))
    out_shape.append(jax.ShapeDtypeStruct((2, wch), jnp.float32))      # BN1 sum/sumsq
    out_specs.append(pl.BlockSpec((2, wch), lambda i: (0, 0)))         # resident accum

    outs1 = pl.pallas_call(
        functools.partial(_conv1_kernel, has_proj=has_proj),
        grid=(rows // tr,),
        out_shape=tuple(out_shape),
        in_specs=in_specs,
        out_specs=tuple(out_specs),
        compiler_params=pltpu.CompilerParams(
            dimension_semantics=("arbitrary",),     # BN stats accumulate across tiles
            vmem_limit_bytes=VMEM_LIMIT),
    )(*in_arrays)
    if has_proj:
        z1, res2d, stats1 = outs1
    else:
        z1, stats1 = outs1
        res2d = x2d                                 # identity residual, same layout

    a1 = _bn_affine(stats1, count, g1, be1, W)      # (2, W*Ch) [scale; shift], tiled

    # ---- stage 2: BN1 + SiLU + 3x3 conv (one image per grid step) + BN2 stats ----
    z2_img, stats2 = pl.pallas_call(
        _conv2_kernel,
        grid=(N,),
        out_shape=(jax.ShapeDtypeStruct((N, H, wco), jnp.float32),
                   jax.ShapeDtypeStruct((2, wco), jnp.float32)),
        in_specs=[pl.BlockSpec((1, H, wch), lambda n: (n, 0, 0)),
                  pl.BlockSpec((2, wch), lambda n: (0, 0)),
                  pl.BlockSpec((3, wch, wco), lambda n: (0, 0, 0))],
        out_specs=(pl.BlockSpec((1, H, wco), lambda n: (n, 0, 0)),
                   pl.BlockSpec((2, wco), lambda n: (0, 0))),
        compiler_params=pltpu.CompilerParams(
            dimension_semantics=("arbitrary",),
            vmem_limit_bytes=VMEM_LIMIT),
    )(z1.reshape(N, H, wch), a1, w2_bd)

    a2 = _bn_affine(stats2, count, g2, be2, W)      # (2, W*Co)

    # ---- stage 3: BN2 + SiLU + residual add (lane-dense, fully parallel) ----
    out2d = pl.pallas_call(
        _bn2_silu_add_kernel,
        grid=(rows // tr,),
        out_shape=jax.ShapeDtypeStruct((rows, wco), x_nchw.dtype),
        in_specs=[pl.BlockSpec((tr, wco), lambda i: (i, 0)),
                  pl.BlockSpec((tr, wco), lambda i: (i, 0)),
                  pl.BlockSpec((2, wco), lambda i: (0, 0))],
        out_specs=pl.BlockSpec((tr, wco), lambda i: (i, 0)),
        compiler_params=pltpu.CompilerParams(
            dimension_semantics=("parallel",),      # both TCs on v7x
            vmem_limit_bytes=VMEM_LIMIT),
    )(z2_img.reshape(rows, wco), res2d, a2)

    return jnp.transpose(out2d.reshape(N, H, W, Co), (0, 3, 1, 2))     # NHWC -> NCHW


# ------------------------------ pure-JAX reference ------------------------------
def _reference(x_nchw, params):
    w1, b1, g1, be1, w2, b2, g2, be2, wr, br = params

    def conv2d(x, w_oihw, b, pad):
        y = jax.lax.conv_general_dilated(
            x, w_oihw, (1, 1), [(pad, pad), (pad, pad)],
            dimension_numbers=('NCHW', 'OIHW', 'NCHW'))
        return y + b.reshape(1, -1, 1, 1)

    def bn(x, g, be):
        m = jnp.mean(x, axis=(0, 2, 3), keepdims=True)
        v = jnp.mean((x - m) ** 2, axis=(0, 2, 3), keepdims=True)
        return (x - m) * jax.lax.rsqrt(v + EPS) * g.reshape(1, -1, 1, 1) + be.reshape(1, -1, 1, 1)

    def silu(x):
        return x * jax.nn.sigmoid(x)

    w1_oihw = jnp.transpose(w1, (1, 0))[:, :, None, None]
    w2_oihw = jnp.transpose(w2, (3, 2, 0, 1))
    y = silu(bn(conv2d(x_nchw, w1_oihw, b1.reshape(-1), pad=0), g1.reshape(-1), be1.reshape(-1)))
    y = silu(bn(conv2d(y, w2_oihw, b2.reshape(-1), pad=1), g2.reshape(-1), be2.reshape(-1)))
    if x_nchw.shape[1] != w2.shape[3]:
        wr_oihw = jnp.transpose(wr, (1, 0))[:, :, None, None]
        res = conv2d(x_nchw, wr_oihw, br.reshape(-1), pad=0)
    else:
        res = x_nchw
    return res + y


def _make_params(key, d_i, d_o):
    d_h = d_o // 2
    ks = jax.random.split(key, 10)
    w1 = jax.random.normal(ks[0], (d_i, d_h), jnp.float32) * 0.1
    b1 = jax.random.normal(ks[1], (1, d_h), jnp.float32) * 0.1
    g1 = jnp.ones((1, d_h), jnp.float32) + 0.1 * jax.random.normal(ks[2], (1, d_h))
    be1 = 0.1 * jax.random.normal(ks[3], (1, d_h))
    w2 = jax.random.normal(ks[4], (3, 3, d_h, d_o), jnp.float32) * 0.1
    b2 = jax.random.normal(ks[5], (1, d_o), jnp.float32) * 0.1
    g2 = jnp.ones((1, d_o), jnp.float32) + 0.1 * jax.random.normal(ks[6], (1, d_o))
    be2 = 0.1 * jax.random.normal(ks[7], (1, d_o))
    wr = jax.random.normal(ks[8], (d_i, d_o), jnp.float32) * 0.1
    br = jax.random.normal(ks[9], (1, d_o), jnp.float32) * 0.1
    return (w1, b1, g1, be1, w2, b2, g2, be2, wr, br)


# ------------------------------ main ------------------------------
if __name__ == "__main__":
    key = jax.random.PRNGKey(0)
    N, H, W = 2, 16, 16
    fwd = jax.jit(bottleneck_forward)
    k_x1, k_p1, k_x2, k_p2 = jax.random.split(key, 4)

    # case 1: d_i != d_o -> residual is a 1x1 projection (fused into stage-1 matmul)
    x1 = jax.random.normal(k_x1, (N, 8, H, W), jnp.float32)
    p1 = _make_params(k_p1, 8, 16)
    out1 = jax.block_until_ready(fwd(x1, p1))
    ref1 = jax.block_until_ready(_reference(x1, p1))
    np.testing.assert_allclose(np.asarray(out1), np.asarray(ref1), rtol=2e-2, atol=2e-2)

    # case 2: d_i == d_o -> identity residual (no projection weights passed/DMA'd)
    x2 = jax.random.normal(k_x2, (N, 16, H, W), jnp.float32)
    p2 = _make_params(k_p2, 16, 16)
    out2 = jax.block_until_ready(fwd(x2, p2))
    ref2 = jax.block_until_ready(_reference(x2, p2))
    np.testing.assert_allclose(np.asarray(out2), np.asarray(ref2), rtol=2e-2, atol=2e-2)

    print("KERNEL_OK")
</pallas_src>

<mosaic_0001>
module attributes {stable_mosaic.version = 11 : i64} {
  func.func @_conv1_kernel(%arg0: i32, %arg1: memref<8x128xf32, #tpu.memory_space<vmem>>, %arg2: memref<128x384xbf16, #tpu.memory_space<vmem>>, %arg3: memref<1x256xf32, #tpu.memory_space<vmem>>, %arg4: memref<8x128xf32, #tpu.memory_space<vmem>>, %arg5: memref<8x256xf32, #tpu.memory_space<vmem>>, %arg6: memref<2x128xf32, #tpu.memory_space<vmem>>) attributes {dimension_semantics = [#tpu.dimension_semantics<arbitrary>], iteration_bounds = array<i64: 4>, scalar_prefetch = 0 : i64, scratch_operands = 0 : i64, tpu.core_type = #tpu.core_type<tc>, window_params = [{transform_indices = @transform_0, window_bounds = array<i64: 8, 128>}, {pipeline_mode = #tpu.pipeline_mode<synchronous>, transform_indices = @transform_1, window_bounds = array<i64: 128, 384>}, {pipeline_mode = #tpu.pipeline_mode<synchronous>, transform_indices = @transform_2, window_bounds = array<i64: 1, 256>}, {transform_indices = @transform_3, window_bounds = array<i64: 8, 128>}, {transform_indices = @transform_4, window_bounds = array<i64: 8, 256>}, {pipeline_mode = #tpu.pipeline_mode<synchronous>, transform_indices = @transform_5, window_bounds = array<i64: 2, 128>}]} {
    %c0 = arith.constant 0 : index
    %c0_0 = arith.constant 0 : index
    %0 = vector.load %arg1[%c0, %c0_0] : memref<8x128xf32, #tpu.memory_space<vmem>>, vector<8x128xf32>
    %1 = arith.truncf %0 : vector<8x128xf32> to vector<8x128xbf16>
    %c0_1 = arith.constant 0 : index
    %c0_2 = arith.constant 0 : index
    %2 = vector.load %arg2[%c0_1, %c0_2] : memref<128x384xbf16, #tpu.memory_space<vmem>>, vector<128x384xbf16>
    %cst = arith.constant dense<0.000000e+00> : vector<8x384xf32>
    %3 = tpu.matmul %1, %2, %cst {dimension_numbers = #tpu.dot_dimension_numbers<[1], [0], [0], [1], [0, 0, 1, 1], [], []>} : vector<8x128xbf16>, vector<128x384xbf16>, vector<8x384xf32> -> vector<8x384xf32>
    %4 = vector.extract_strided_slice %3 {offsets = [0, 0], sizes = [8, 128], strides = [1, 1]} : vector<8x384xf32> to vector<8x128xf32>
    %c0_3 = arith.constant 0 : index
    %c0_4 = arith.constant 0 : index
    %5 = vector.load %arg4[%c0_3, %c0_4] : memref<8x128xf32, #tpu.memory_space<vmem>>, vector<8x128xf32>
    tpu.vector_store %arg4[%c0_3, %c0_4], %4 {strides = array<i32>} : memref<8x128xf32, #tpu.memory_space<vmem>>, vector<8x128xf32>,
    %6 = vector.extract_strided_slice %3 {offsets = [0, 128], sizes = [8, 256], strides = [1, 1]} : vector<8x384xf32> to vector<8x256xf32>
    %c0_5 = arith.constant 0 : index
    %c0_6 = arith.constant 0 : index
    %7 = vector.load %arg3[%c0_5, %c0_6] : memref<1x256xf32, #tpu.memory_space<vmem>>, vector<1x256xf32>
    %8 = vector.broadcast %7 : vector<1x256xf32> to vector<8x256xf32>
    %9 = arith.addf %6, %8 : vector<8x256xf32>
    %c0_7 = arith.constant 0 : index
    %c0_8 = arith.constant 0 : index
    %10 = vector.load %arg5[%c0_7, %c0_8] : memref<8x256xf32, #tpu.memory_space<vmem>>, vector<8x256xf32>
    tpu.vector_store %arg5[%c0_7, %c0_8], %9 {strides = array<i32>} : memref<8x256xf32, #tpu.memory_space<vmem>>, vector<8x256xf32>,
    %cst_9 = arith.constant dense<0.000000e+00> : vector<128xf32>
    %11 = vector.multi_reduction <add>, %4, %cst_9 [0] : vector<8x128xf32> to vector<128xf32>
    %12 = vector.shape_cast %11 : vector<128xf32> to vector<1x128xf32>
    %13 = arith.mulf %4, %4 : vector<8x128xf32>
    %cst_10 = arith.constant dense<0.000000e+00> : vector<128xf32>
    %14 = vector.multi_reduction <add>, %13, %cst_10 [0] : vector<8x128xf32> to vector<128xf32>
    %15 = vector.shape_cast %14 : vector<128xf32> to vector<1x128xf32>
    %16 = tpu.concatenate %12, %15 in 0 : vector<1x128xf32>, vector<1x128xf32> -> vector<2x128xf32>
    %c0_i32 = arith.constant 0 : i32
    %17 = arith.cmpi eq, %arg0, %c0_i32 : i32
    %18 = arith.extui %17 : i1 to i32
    %c0_i32_11 = arith.constant 0 : i32
    %19 = arith.cmpi ne, %18, %c0_i32_11 : i32
    scf.if %19 {
      %cst_16 = arith.constant 0.000000e+00 : f32
      %23 = vector.broadcast %cst_16 : f32 to vector<2x128xf32>
      %c0_17 = arith.constant 0 : index
      %c0_18 = arith.constant 0 : index
      %24 = vector.load %arg6[%c0_17, %c0_18] : memref<2x128xf32, #tpu.memory_space<vmem>>, vector<2x128xf32>
      tpu.vector_store %arg6[%c0_17, %c0_18], %23 {strides = array<i32>} : memref<2x128xf32, #tpu.memory_space<vmem>>, vector<2x128xf32>,
    } else {
    }
    %c0_12 = arith.constant 0 : index
    %c0_13 = arith.constant 0 : index
    %20 = vector.load %arg6[%c0_12, %c0_13] : memref<2x128xf32, #tpu.memory_space<vmem>>, vector<2x128xf32>
    %21 = arith.addf %20, %16 : vector<2x128xf32>
    %c0_14 = arith.constant 0 : index
    %c0_15 = arith.constant 0 : index
    %22 = vector.load %arg6[%c0_14, %c0_15] : memref<2x128xf32, #tpu.memory_space<vmem>>, vector<2x128xf32>
    tpu.vector_store %arg6[%c0_14, %c0_15], %21 {strides = array<i32>} : memref<2x128xf32, #tpu.memory_space<vmem>>, vector<2x128xf32>,
    return
  }
  func.func @transform_0(%arg0: i32) -> (i32, i32) {
    %c0_i32 = arith.constant 0 : i32
    %c0_i32_0 = arith.constant 0 : i32
    return %arg0, %c0_i32 : i32, i32
  }
  func.func @transform_1(%arg0: i32) -> (i32, i32) {
    %c0_i32 = arith.constant 0 : i32
    %c0_i32_0 = arith.constant 0 : i32
    %c0_i32_1 = arith.constant 0 : i32
    return %c0_i32, %c0_i32_0 : i32, i32
  }
  func.func @transform_2(%arg0: i32) -> (i32, i32) {
    %c0_i32 = arith.constant 0 : i32
    %c0_i32_0 = arith.constant 0 : i32
    %c0_i32_1 = arith.constant 0 : i32
    return %c0_i32, %c0_i32_0 : i32, i32
  }
  func.func @transform_3(%arg0: i32) -> (i32, i32) {
    %c0_i32 = arith.constant 0 : i32
    %c0_i32_0 = arith.constant 0 : i32
    return %arg0, %c0_i32 : i32, i32
  }
  func.func @transform_4(%arg0: i32) -> (i32, i32) {
    %c0_i32 = arith.constant 0 : i32
    %c0_i32_0 = arith.constant 0 : i32
    return %arg0, %c0_i32 : i32, i32
  }
  func.func @transform_5(%arg0: i32) -> (i32, i32) {
    %c0_i32 = arith.constant 0 : i32
    %c0_i32_0 = arith.constant 0 : i32
    %c0_i32_1 = arith.constant 0 : i32
    return %c0_i32, %c0_i32_0 : i32, i32
  }
}

module attributes {stable_mosaic.version = 11 : i64} {
  func.func @_conv2_kernel(%arg0: i32, %arg1: memref<1x16x128xf32, #tpu.memory_space<vmem>>, %arg2: memref<2x128xf32, #tpu.memory_space<vmem>>, %arg3: memref<3x128x256xbf16, #tpu.memory_space<vmem>>, %arg4: memref<1x16x256xf32, #tpu.memory_space<vmem>>, %arg5: memref<2x256xf32, #tpu.memory_space<vmem>>) attributes {dimension_semantics = [#tpu.dimension_semantics<arbitrary>], iteration_bounds = array<i64: 2>, scalar_prefetch = 0 : i64, scratch_operands = 0 : i64, tpu.core_type = #tpu.core_type<tc>, window_params = [{transform_indices = @transform_0, window_bounds = array<i64: 1, 16, 128>}, {pipeline_mode = #tpu.pipeline_mode<synchronous>, transform_indices = @transform_1, window_bounds = array<i64: 2, 128>}, {pipeline_mode = #tpu.pipeline_mode<synchronous>, transform_indices = @transform_2, window_bounds = array<i64: 3, 128, 256>}, {transform_indices = @transform_3, window_bounds = array<i64: 1, 16, 256>}, {pipeline_mode = #tpu.pipeline_mode<synchronous>, transform_indices = @transform_4, window_bounds = array<i64: 2, 256>}]} {
    %c0 = arith.constant 0 : index
    %c0_0 = arith.constant 0 : index
    %c0_1 = arith.constant 0 : index
    %0 = vector.load %arg1[%c0, %c0_0, %c0_1] : memref<1x16x128xf32, #tpu.memory_space<vmem>>, vector<1x16x128xf32>
    %1 = vector.shape_cast %0 : vector<1x16x128xf32> to vector<16x128xf32>
    %c0_2 = arith.constant 0 : index
    %c0_3 = arith.constant 0 : index
    %2 = vector.load %arg2[%c0_2, %c0_3] : memref<2x128xf32, #tpu.memory_space<vmem>>, vector<1x128xf32>
    %3 = vector.broadcast %2 : vector<1x128xf32> to vector<16x128xf32>
    %4 = arith.mulf %1, %3 : vector<16x128xf32>
    %c1 = arith.constant 1 : index
    %c0_4 = arith.constant 0 : index
    %5 = vector.load %arg2[%c1, %c0_4] : memref<2x128xf32, #tpu.memory_space<vmem>>, vector<1x128xf32>
    %6 = vector.broadcast %5 : vector<1x128xf32> to vector<16x128xf32>
    %7 = arith.addf %4, %6 : vector<16x128xf32>
    %8 = arith.negf %7 : vector<16x128xf32>
    %9 = math.exp %8 : vector<16x128xf32>
    %cst = arith.constant 1.000000e+00 : f32
    %10 = vector.broadcast %cst : f32 to vector<16x128xf32>
    %11 = arith.addf %10, %9 : vector<16x128xf32>
    %12 = arith.divf %10, %11 : vector<16x128xf32>
    %13 = arith.mulf %7, %12 : vector<16x128xf32>
    %cst_5 = arith.constant 0.000000e+00 : f32
    %14 = vector.broadcast %cst_5 : f32 to vector<1x128xf32>
    %15 = vector.extract_strided_slice %13 {offsets = [0, 0], sizes = [15, 128], strides = [1, 1]} : vector<16x128xf32> to vector<15x128xf32>
    %16 = tpu.concatenate %14, %15 in 0 : vector<1x128xf32>, vector<15x128xf32> -> vector<16x128xf32>
    %17 = vector.extract_strided_slice %13 {offsets = [1, 0], sizes = [15, 128], strides = [1, 1]} : vector<16x128xf32> to vector<15x128xf32>
    %18 = tpu.concatenate %17, %14 in 0 : vector<15x128xf32>, vector<1x128xf32> -> vector<16x128xf32>
    %19 = arith.truncf %16 : vector<16x128xf32> to vector<16x128xbf16>
    %c0_6 = arith.constant 0 : index
    %c0_7 = arith.constant 0 : index
    %c0_8 = arith.constant 0 : index
    %20 = vector.load %arg3[%c0_6, %c0_7, %c0_8] : memref<3x128x256xbf16, #tpu.memory_space<vmem>>, vector<1x128x256xbf16>
    %21 = vector.shape_cast %20 : vector<1x128x256xbf16> to vector<128x256xbf16>
    %cst_9 = arith.constant dense<0.000000e+00> : vector<16x256xf32>
    %22 = tpu.matmul %19, %21, %cst_9 {dimension_numbers = #tpu.dot_dimension_numbers<[1], [0], [0], [1], [0, 0, 1, 1], [], []>} : vector<16x128xbf16>, vector<128x256xbf16>, vector<16x256xf32> -> vector<16x256xf32>
    %23 = arith.truncf %13 : vector<16x128xf32> to vector<16x128xbf16>
    %c1_10 = arith.constant 1 : index
    %c0_11 = arith.constant 0 : index
    %c0_12 = arith.constant 0 : index
    %24 = vector.load %arg3[%c1_10, %c0_11, %c0_12] : memref<3x128x256xbf16, #tpu.memory_space<vmem>>, vector<1x128x256xbf16>
    %25 = vector.shape_cast %24 : vector<1x128x256xbf16> to vector<128x256xbf16>
    %cst_13 = arith.constant dense<0.000000e+00> : vector<16x256xf32>
    %26 = tpu.matmul %23, %25, %cst_13 {dimension_numbers = #tpu.dot_dimension_numbers<[1], [0], [0], [1], [0, 0, 1, 1], [], []>} : vector<16x128xbf16>, vector<128x256xbf16>, vector<16x256xf32> -> vector<16x256xf32>
    %27 = arith.addf %22, %26 : vector<16x256xf32>
    %28 = arith.truncf %18 : vector<16x128xf32> to vector<16x128xbf16>
    %c2 = arith.constant 2 : index
    %c0_14 = arith.constant 0 : index
    %c0_15 = arith.constant 0 : index
    %29 = vector.load %arg3[%c2, %c0_14, %c0_15] : memref<3x128x256xbf16, #tpu.memory_space<vmem>>, vector<1x128x256xbf16>
    %30 = vector.shape_cast %29 : vector<1x128x256xbf16> to vector<128x256xbf16>
    %cst_16 = arith.constant dense<0.000000e+00> : vector<16x256xf32>
    %31 = tpu.matmul %28, %30, %cst_16 {dimension_numbers = #tpu.dot_dimension_numbers<[1], [0], [0], [1], [0, 0, 1, 1], [], []>} : vector<16x128xbf16>, vector<128x256xbf16>, vector<16x256xf32> -> vector<16x256xf32>
    %32 = arith.addf %27, %31 : vector<16x256xf32>
    %c0_17 = arith.constant 0 : index
    %c0_18 = arith.constant 0 : index
    %c0_19 = arith.constant 0 : index
    %33 = vector.load %arg4[%c0_17, %c0_18, %c0_19] : memref<1x16x256xf32, #tpu.memory_space<vmem>>, vector<1x16x256xf32>
    %34 = vector.shape_cast %33 : vector<1x16x256xf32> to vector<16x256xf32>
    %35 = vector.shape_cast %32 : vector<16x256xf32> to vector<1x16x256xf32>
    tpu.vector_store %arg4[%c0_17, %c0_18, %c0_19], %35 {strides = array<i32>} : memref<1x16x256xf32, #tpu.memory_space<vmem>>, vector<1x16x256xf32>,
    %cst_20 = arith.constant dense<0.000000e+00> : vector<256xf32>
    %36 = vector.multi_reduction <add>, %32, %cst_20 [0] : vector<16x256xf32> to vector<256xf32>
    %37 = vector.shape_cast %36 : vector<256xf32> to vector<1x256xf32>
    %38 = arith.mulf %32, %32 : vector<16x256xf32>
    %cst_21 = arith.constant dense<0.000000e+00> : vector<256xf32>
    %39 = vector.multi_reduction <add>, %38, %cst_21 [0] : vector<16x256xf32> to vector<256xf32>
    %40 = vector.shape_cast %39 : vector<256xf32> to vector<1x256xf32>
    %41 = tpu.concatenate %37, %40 in 0 : vector<1x256xf32>, vector<1x256xf32> -> vector<2x256xf32>
    %c0_i32 = arith.constant 0 : i32
    %42 = arith.cmpi eq, %arg0, %c0_i32 : i32
    %43 = arith.extui %42 : i1 to i32
    %c0_i32_22 = arith.constant 0 : i32
    %44 = arith.cmpi ne, %43, %c0_i32_22 : i32
    scf.if %44 {
      %cst_27 = arith.constant 0.000000e+00 : f32
      %48 = vector.broadcast %cst_27 : f32 to vector<2x256xf32>
      %c0_28 = arith.constant 0 : index
      %c0_29 = arith.constant 0 : index
      %49 = vector.load %arg5[%c0_28, %c0_29] : memref<2x256xf32, #tpu.memory_space<vmem>>, vector<2x256xf32>
      tpu.vector_store %arg5[%c0_28, %c0_29], %48 {strides = array<i32>} : memref<2x256xf32, #tpu.memory_space<vmem>>, vector<2x256xf32>,
    } else {
    }
    %c0_23 = arith.constant 0 : index
    %c0_24 = arith.constant 0 : index
    %45 = vector.load %arg5[%c0_23, %c0_24] : memref<2x256xf32, #tpu.memory_space<vmem>>, vector<2x256xf32>
    %46 = arith.addf %45, %41 : vector<2x256xf32>
    %c0_25 = arith.constant 0 : index
    %c0_26 = arith.constant 0 : index
    %47 = vector.load %arg5[%c0_25, %c0_26] : memref<2x256xf32, #tpu.memory_space<vmem>>, vector<2x256xf32>
    tpu.vector_store %arg5[%c0_25, %c0_26], %46 {strides = array<i32>} : memref<2x256xf32, #tpu.memory_space<vmem>>, vector<2x256xf32>,
    return
  }
  func.func @transform_0(%arg0: i32) -> (i32, i32, i32) {
    %c0_i32 = arith.constant 0 : i32
    %c0_i32_0 = arith.constant 0 : i32
    %c0_i32_1 = arith.constant 0 : i32
    return %arg0, %c0_i32, %c0_i32_0 : i32, i32, i32
  }
  func.func @transform_1(%arg0: i32) -> (i32, i32) {
    %c0_i32 = arith.constant 0 : i32
    %c0_i32_0 = arith.constant 0 : i32
    %c0_i32_1 = arith.constant 0 : i32
    return %c0_i32, %c0_i32_0 : i32, i32
  }
  func.func @transform_2(%arg0: i32) -> (i32, i32, i32) {
    %c0_i32 = arith.constant 0 : i32
    %c0_i32_0 = arith.constant 0 : i32
    %c0_i32_1 = arith.constant 0 : i32
    %c0_i32_2 = arith.constant 0 : i32
    return %c0_i32, %c0_i32_0, %c0_i32_1 : i32, i32, i32
  }
  func.func @transform_3(%arg0: i32) -> (i32, i32, i32) {
    %c0_i32 = arith.constant 0 : i32
    %c0_i32_0 = arith.constant 0 : i32
    %c0_i32_1 = arith.constant 0 : i32
    return %arg0, %c0_i32, %c0_i32_0 : i32, i32, i32
  }
  func.func @transform_4(%arg0: i32) -> (i32, i32) {
    %c0_i32 = arith.constant 0 : i32
    %c0_i32_0 = arith.constant 0 : i32
    %c0_i32_1 = arith.constant 0 : i32
    return %c0_i32, %c0_i32_0 : i32, i32
  }
}

module attributes {stable_mosaic.version = 11 : i64} {
  func.func @_bn2_silu_add_kernel(%arg0: i32, %arg1: memref<8x256xf32, #tpu.memory_space<vmem>>, %arg2: memref<8x256xf32, #tpu.memory_space<vmem>>, %arg3: memref<2x256xf32, #tpu.memory_space<vmem>>, %arg4: memref<8x256xf32, #tpu.memory_space<vmem>>) attributes {dimension_semantics = [#tpu.dimension_semantics<parallel>], iteration_bounds = array<i64: 4>, scalar_prefetch = 0 : i64, scratch_operands = 0 : i64, tpu.core_type = #tpu.core_type<tc>, window_params = [{transform_indices = @transform_0, window_bounds = array<i64: 8, 256>}, {transform_indices = @transform_1, window_bounds = array<i64: 8, 256>}, {pipeline_mode = #tpu.pipeline_mode<synchronous>, transform_indices = @transform_2, window_bounds = array<i64: 2, 256>}, {transform_indices = @transform_3, window_bounds = array<i64: 8, 256>}]} {
    %c0 = arith.constant 0 : index
    %c0_0 = arith.constant 0 : index
    %0 = vector.load %arg1[%c0, %c0_0] : memref<8x256xf32, #tpu.memory_space<vmem>>, vector<8x256xf32>
    %c0_1 = arith.constant 0 : index
    %c0_2 = arith.constant 0 : index
    %1 = vector.load %arg3[%c0_1, %c0_2] : memref<2x256xf32, #tpu.memory_space<vmem>>, vector<1x256xf32>
    %2 = vector.broadcast %1 : vector<1x256xf32> to vector<8x256xf32>
    %3 = arith.mulf %0, %2 : vector<8x256xf32>
    %c1 = arith.constant 1 : index
    %c0_3 = arith.constant 0 : index
    %4 = vector.load %arg3[%c1, %c0_3] : memref<2x256xf32, #tpu.memory_space<vmem>>, vector<1x256xf32>
    %5 = vector.broadcast %4 : vector<1x256xf32> to vector<8x256xf32>
    %6 = arith.addf %3, %5 : vector<8x256xf32>
    %7 = arith.negf %6 : vector<8x256xf32>
    %8 = math.exp %7 : vector<8x256xf32>
    %cst = arith.constant 1.000000e+00 : f32
    %9 = vector.broadcast %cst : f32 to vector<8x256xf32>
    %10 = arith.addf %9, %8 : vector<8x256xf32>
    %11 = arith.divf %9, %10 : vector<8x256xf32>
    %12 = arith.mulf %6, %11 : vector<8x256xf32>
    %c0_4 = arith.constant 0 : index
    %c0_5 = arith.constant 0 : index
    %13 = vector.load %arg2[%c0_4, %c0_5] : memref<8x256xf32, #tpu.memory_space<vmem>>, vector<8x256xf32>
    %14 = arith.addf %13, %12 : vector<8x256xf32>
    %c0_6 = arith.constant 0 : index
    %c0_7 = arith.constant 0 : index
    %15 = vector.load %arg4[%c0_6, %c0_7] : memref<8x256xf32, #tpu.memory_space<vmem>>, vector<8x256xf32>
    tpu.vector_store %arg4[%c0_6, %c0_7], %14 {strides = array<i32>} : memref<8x256xf32, #tpu.memory_space<vmem>>, vector<8x256xf32>,
    return
  }
  func.func @transform_0(%arg0: i32) -> (i32, i32) {
    %c0_i32 = arith.constant 0 : i32
    %c0_i32_0 = arith.constant 0 : i32
    return %arg0, %c0_i32 : i32, i32
  }
  func.func @transform_1(%arg0: i32) -> (i32, i32) {
    %c0_i32 = arith.constant 0 : i32
    %c0_i32_0 = arith.constant 0 : i32
    return %arg0, %c0_i32 : i32, i32
  }
  func.func @transform_2(%arg0: i32) -> (i32, i32) {
    %c0_i32 = arith.constant 0 : i32
    %c0_i32_0 = arith.constant 0 : i32
    %c0_i32_1 = arith.constant 0 : i32
    return %c0_i32, %c0_i32_0 : i32, i32
  }
  func.func @transform_3(%arg0: i32) -> (i32, i32) {
    %c0_i32 = arith.constant 0 : i32
    %c0_i32_0 = arith.constant 0 : i32
    return %arg0, %c0_i32 : i32, i32
  }
}

</mosaic_0001>

<llo_original>
// kernel: tile.26
$region0: #{tile.26}
  #allocation2 [shape = 's32[1]{0}', space=sflag, size = 0x4, scoped, tag = 'scoped memory for tile.26']
  %s0 = inlined_call_operand.hbm [shape: f32[16], index: 0, kind: input, shape index: {}]
  %s1 = inlined_call_operand.vmem [shape: f32[16,16], index: 1, kind: output, shape index: {}]
  $region1: #{tile.26} parent=0
    #allocation0 [shape = 'u8[512]{0}', space=vmem, size = 0x400, scoped, tag = 'operand span for operand 0']
    #allocation1 [shape = 's32[1]{0}', space=sflag, size = 0x4, scoped, tag = 'scoped memory for tile.26']
    %2 = vsyncpa [#allocation1], 0
    // Predicated region
    $region2: #{tile.26} parent=1 // pred_check
      _
    $region3: #{tile.26} parent=1 // pred_check_branch
      %4 = sbr.rel (0) target = $region5
    $region4: #{tile.26} parent=1 // pred_region
      %s6 = ssub.s32 16, 16
      %7 = vsyncadd [#allocation1], %s6
      %s9 = sshll.u32 [#allocation0], 4
      %s10 = int_to_ptr.vmem [resolvable:$true] %s9
      %12 = dma.hbm_to_vmem [thread:$0]  %s0, 16, %s10, [#allocation1]
    $region5: #{tile.26} parent=1 // pred_fallthru
      _
    // Predicated region
    $region6: #{tile.26} parent=1 // pred_check
      _
    $region7: #{tile.26} parent=1 // pred_check_branch
      %14 = sbr.rel (0) target = $region9
    $region8: #{tile.26} parent=1 // pred_region
      %15 = dma.done [#allocation1], 16
    $region9: #{tile.26} parent=1 // pred_fallthru
      _
    %v16 = vld [vmem:[#allocation0] ss:$0 sm:$0xff]
    %17 = vst [vmem:[%s1] sm:$0xff] %v16
    %s18 = scalar_lea.vmem %s1, 8
    %19 = vst [vmem:[%s18] sm:$0xff] %v16
    %20 = vsyncpa [#allocation1], 1

// kernel: tile.27
$region0: #{tile.27}
  %s0 = inlined_call_operand.vmem [shape: f32[16,16], index: 0, kind: input, shape index: {}]
  %s1 = inlined_call_operand.vmem [shape: f32[1,256], index: 1, kind: output, shape index: {}]
  $region1: #{tile.27} parent=0
    #allocation0 [shape = 'u8[8192]{0}', space=vmem, size = 0x2000, scoped, tag = 'scoped mem for output reshape']
    %s2 = smov 3
    %v3 = vld [vmem:[%s0] ss:$8 sm:%s2]
    %vm4 = vcmask 130048
    %5 = vst.msk [vmem:[#allocation0] ss:$8 sm:$0x3] %vm4, %v3
    %s6 = scalar_lea.vmem %s0, 7
    %s7 = smov 3
    %v8 = vld [vmem:[%s6] ss:$8 sm:%s7]
    %9 = vrot.lane.b32.xlu0 %v8, 112
    %v10 = vpop.permute.xlu0 %9
    %vm11 = vcmask 1048448
    %12 = vst.msk [vmem:[#allocation0] ss:$8 sm:$0x3] %vm11, %v10
    %s13 = scalar_lea.vmem %s0, 6
    %s14 = smov 3
    %v15 = vld [vmem:[%s13] ss:$8 sm:%s14]
    %16 = vrot.lane.b32.xlu0 %v15, 96
    %v17 = vpop.permute.xlu0 %16
    %vm18 = vcmask 917248
    %19 = vst.msk [vmem:[#allocation0] ss:$8 sm:$0x3] %vm18, %v17
    %s20 = scalar_lea.vmem %s0, 5
    %s21 = smov 3
    %v22 = vld [vmem:[%s20] ss:$8 sm:%s21]
    %23 = vrot.lane.b32.xlu0 %v22, 80
    %v24 = vpop.permute.xlu0 %23
    %vm25 = vcmask 786048
    %26 = vst.msk [vmem:[#allocation0] ss:$8 sm:$0x3] %vm25, %v24
    %s27 = scalar_lea.vmem %s0, 4
    %s28 = smov 3
    %v29 = vld [vmem:[%s27] ss:$8 sm:%s28]
    %30 = vrot.lane.b32.xlu0 %v29, 64
    %v31 = vpop.permute.xlu0 %30
    %vm32 = vcmask 654848
    %33 = vst.msk [vmem:[#allocation0] ss:$8 sm:$0x3] %vm32, %v31
    %s34 = scalar_lea.vmem %s0, 3
    %s35 = smov 3
    %v36 = vld [vmem:[%s34] ss:$8 sm:%s35]
    %37 = vrot.lane.b32.xlu0 %v36, 48
    %v38 = vpop.permute.xlu0 %37
    %vm39 = vcmask 523648
    %40 = vst.msk [vmem:[#allocation0] ss:$8 sm:$0x3] %vm39, %v38
    %s41 = scalar_lea.vmem %s0, 2
    %s42 = smov 3
    %v43 = vld [vmem:[%s41] ss:$8 sm:%s42]
    %44 = vrot.lane.b32.xlu0 %v43, 32
    %v45 = vpop.permute.xlu0 %44
    %vm46 = vcmask 392448
    %47 = vst.msk [vmem:[#allocation0] ss:$8 sm:$0x3] %vm46, %v45
    %s48 = scalar_lea.vmem %s0, 1
    %s49 = smov 3
    %v50 = vld [vmem:[%s48] ss:$8 sm:%s49]
    %51 = vrot.lane.b32.xlu0 %v50, 16
    %v52 = vpop.permute.xlu0 %51
    %vm53 = vcmask 261248
    %54 = vst.msk [vmem:[#allocation0] ss:$8 sm:$0x3] %vm53, %v52
    %s56 = sshll.u32 1, 1
    %s57 = ssub.s32 %s56, 1
    %v59 = vld [vmem:[#allocation0] sm:%s57]
    %s60 = sshll.u32 1, 1
    %s61 = ssub.s32 %s60, 1
    %62 = vst [vmem:[%s1] sm:%s61] %v59
    %s63 = scalar_lea.vmem [#allocation0], 8
    %v64 = vld [vmem:[%s63] sm:%s57]
    %s65 = sshll.u32 1, 1
    %s66 = ssub.s32 %s65, 1
    %s67 = scalar_lea.vmem %s1, 1
    %68 = vst [vmem:[%s67] sm:%s66] %v64

// kernel: tile.31
$region0: #{tile.31}
  #allocation0 [shape = 's32[1]{0}', space=sflag, size = 0x4, scoped, tag = 'scoped memory for tile.31']
  %s0 = inlined_call_operand.vmem [shape: f32[8], index: 0, kind: input, shape index: {}]
  %s1 = inlined_call_operand.vmem [shape: f32[16,8], index: 1, kind: output, shape index: {}]
  // Predicated region
  $region2: #{tile.31} parent=0 // pred_check
    _
  $region3: #{tile.31} parent=0 // pred_check_branch
    %3 = sbr.rel (0) target = $region5
  $region4: #{tile.31} parent=0 // pred_region
    _
  $region5: #{tile.31} parent=0 // pred_fallthru
    _
  %v4 = vld [vmem:[%s0] ss:$0 sm:$0xff]
  %5 = vst [vmem:[%s1] sm:$0xff] %v4
  %s6 = scalar_lea.vmem %s1, 8
  %7 = vst [vmem:[%s6] sm:$0xff] %v4

// kernel: tile.36
$region0: #{tile.36}
  %s0 = inlined_call_operand.vmem [shape: f32[16,8], index: 0, kind: input, shape index: {}]
  %s1 = inlined_call_operand.vmem [shape: f32[1,128], index: 1, kind: output, shape index: {}]
  $region1: #{tile.36} parent=0
    #allocation0 [shape = 'u8[4096]{0}', space=vmem, size = 0x1000, scoped, tag = 'scoped mem for output reshape']
    %v2 = vld [vmem:[%s0] sm:$0x1]
    %vm3 = vcmask 64512
    %4 = vst.msk [vmem:[#allocation0] sm:$0x1] %vm3, %v2
    %s5 = scalar_lea.vmem %s0, 15
    %v6 = vld [vmem:[%s5] sm:$0x1]
    %7 = vrot.lane.b32.xlu0 %v6, 120
    %v8 = vpop.permute.xlu0 %7
    %vm9 = vcmask 1048512
    %10 = vst.msk [vmem:[#allocation0] sm:$0x1] %vm9, %v8
    %s11 = scalar_lea.vmem %s0, 14
    %v12 = vld [vmem:[%s11] sm:$0x1]
    %13 = vrot.lane.b32.xlu0 %v12, 112
    %v14 = vpop.permute.xlu0 %13
    %vm15 = vcmask 982912
    %16 = vst.msk [vmem:[#allocation0] sm:$0x1] %vm15, %v14
    %s17 = scalar_lea.vmem %s0, 13
    %v18 = vld [vmem:[%s17] sm:$0x1]
    %19 = vrot.lane.b32.xlu0 %v18, 104
    %v20 = vpop.permute.xlu0 %19
    %vm21 = vcmask 917312
    %22 = vst.msk [vmem:[#allocation0] sm:$0x1] %vm21, %v20
    %s23 = scalar_lea.vmem %s0, 12
    %v24 = vld [vmem:[%s23] sm:$0x1]
    %25 = vrot.lane.b32.xlu0 %v24, 96
    %v26 = vpop.permute.xlu0 %25
    %vm27 = vcmask 851712
    %28 = vst.msk [vmem:[#allocation0] sm:$0x1] %vm27, %v26
    %s29 = scalar_lea.vmem %s0, 11
    %v30 = vld [vmem:[%s29] sm:$0x1]
    %31 = vrot.lane.b32.xlu0 %v30, 88
    %v32 = vpop.permute.xlu0 %31
    %vm33 = vcmask 786112
    %34 = vst.msk [vmem:[#allocation0] sm:$0x1] %vm33, %v32
    %s35 = scalar_lea.vmem %s0, 10
    %v36 = vld [vmem:[%s35] sm:$0x1]
    %37 = vrot.lane.b32.xlu0 %v36, 80
    %v38 = vpop.permute.xlu0 %37
    %vm39 = vcmask 720512
    %40 = vst.msk [vmem:[#allocation0] sm:$0x1] %vm39, %v38
    %s41 = scalar_lea.vmem %s0, 9
    %v42 = vld [vmem:[%s41] sm:$0x1]
    %43 = vrot.lane.b32.xlu0 %v42, 72
    %v44 = vpop.permute.xlu0 %43
    %vm45 = vcmask 654912
    %46 = vst.msk [vmem:[#allocation0] sm:$0x1] %vm45, %v44
    %s47 = scalar_lea.vmem %s0, 8
    %v48 = vld [vmem:[%s47] sm:$0x1]
    %49 = vrot.lane.b32.xlu0 %v48, 64
    %v50 = vpop.permute.xlu0 %49
    %vm51 = vcmask 589312
    %52 = vst.msk [vmem:[#allocation0] sm:$0x1] %vm51, %v50
    %s53 = scalar_lea.vmem %s0, 7
    %v54 = vld [vmem:[%s53] sm:$0x1]
    %55 = vrot.lane.b32.xlu0 %v54, 56
    %v56 = vpop.permute.xlu0 %55
    %vm57 = vcmask 523712
    %58 = vst.msk [vmem:[#allocation0] sm:$0x1] %vm57, %v56
    %s59 = scalar_lea.vmem %s0, 6
    %v60 = vld [vmem:[%s59] sm:$0x1]
    %61 = vrot.lane.b32.xlu0 %v60, 48
    %v62 = vpop.permute.xlu0 %61
    %vm63 = vcmask 458112
    %64 = vst.msk [vmem:[#allocation0] sm:$0x1] %vm63, %v62
    %s65 = scalar_lea.vmem %s0, 5
    %v66 = vld [vmem:[%s65] sm:$0x1]
    %67 = vrot.lane.b32.xlu0 %v66, 40
    %v68 = vpop.permute.xlu0 %67
    %vm69 = vcmask 392512
    %70 = vst.msk [vmem:[#allocation0] sm:$0x1] %vm69, %v68
    %s71 = scalar_lea.vmem %s0, 4
    %v72 = vld [vmem:[%s71] sm:$0x1]
    %73 = vrot.lane.b32.xlu0 %v72, 32
    %v74 = vpop.permute.xlu0 %73
    %vm75 = vcmask 326912
    %76 = vst.msk [vmem:[#allocation0] sm:$0x1] %vm75, %v74
    %s77 = scalar_lea.vmem %s0, 3
    %v78 = vld [vmem:[%s77] sm:$0x1]
    %79 = vrot.lane.b32.xlu0 %v78, 24
    %v80 = vpop.permute.xlu0 %79
    %vm81 = vcmask 261312
    %82 = vst.msk [vmem:[#allocation0] sm:$0x1] %vm81, %v80
    %s83 = scalar_lea.vmem %s0, 2
    %v84 = vld [vmem:[%s83] sm:$0x1]
    %85 = vrot.lane.b32.xlu0 %v84, 16
    %v86 = vpop.permute.xlu0 %85
    %vm87 = vcmask 195712
    %88 = vst.msk [vmem:[#allocation0] sm:$0x1] %vm87, %v86
    %s89 = scalar_lea.vmem %s0, 1
    %v90 = vld [vmem:[%s89] sm:$0x1]
    %91 = vrot.lane.b32.xlu0 %v90, 8
    %v92 = vpop.permute.xlu0 %91
    %vm93 = vcmask 130112
    %94 = vst.msk [vmem:[#allocation0] sm:$0x1] %vm93, %v92
    %s96 = sshll.u32 1, 1
    %s97 = ssub.s32 %s96, 1
    %v99 = vld [vmem:[#allocation0] sm:%s97]
    %s100 = sshll.u32 1, 1
    %s101 = ssub.s32 %s100, 1
    %102 = vst [vmem:[%s1] sm:%s101] %v99

// kernel: tile.41
$region0: #{tile.41}
  #allocation0 [shape = 's32[1]{0}', space=sflag, size = 0x4, scoped, tag = 'scoped memory for tile.41']
  %s0 = inlined_call_operand.vmem [shape: f32[16], index: 0, kind: input, shape index: {}]
  %s1 = inlined_call_operand.vmem [shape: f32[16,16], index: 1, kind: output, shape index: {}]
  // Predicated region
  $region2: #{tile.41} parent=0 // pred_check
    _
  $region3: #{tile.41} parent=0 // pred_check_branch
    %3 = sbr.rel (0) target = $region5
  $region4: #{tile.41} parent=0 // pred_region
    _
  $region5: #{tile.41} parent=0 // pred_fallthru
    _
  %v4 = vld [vmem:[%s0] ss:$0 sm:$0xff]
  %5 = vst [vmem:[%s1] sm:$0xff] %v4
  %s6 = scalar_lea.vmem %s1, 8
  %7 = vst [vmem:[%s6] sm:$0xff] %v4

// kernel: bottleneck_forward.5
$region0: #{bottleneck_forward.5}
  #allocation0 [shape = 'u32[]', space=smem, size = 0x4, offset = 0x4, fixed_abs, tag = 'smem constant byte address 0x4 - core index']
  #allocation1 [shape = 'u32[144,128]{1,0:T(1,128)}', space=vmem, size = 0x12000, scoped, tag = 'internal scratch']
  %s0 = inlined_call_operand.vmem [shape: f32[32,256], index: 0, kind: input, shape index: {}]
  %s1 = inlined_call_operand.vmem [shape: f32[32,256], index: 1, kind: input, shape index: {}]
  %s2 = inlined_call_operand.vmem [shape: f32[2,256], index: 2, kind: input, shape index: {}]
  %s3 = inlined_call_operand.vmem [shape: f32[32,256], index: 3, kind: output, shape index: {}]
  %s4 = sld [smem:[#allocation0]]
  $region45: #{bottleneck_forward.5} parent=0
    _
  %s6 = ssub.s32 1, %s4
  %s7 = scalar_select 0, %s6, %s4
  loop: start=0, step=1, limit=6
  $region2: #{bottleneck_forward.5} parent=0 // loop_pre_header
    _
  $region3: #{bottleneck_forward.5} parent=0 // loop_header
    %s9 = sphi 0, %s13
    %p10 = scmp.ge.s32.totalorder %s9, 6
    %s19 = sphi 0, %s21
    %s22 = sphi 0, %s19
    %s23 = sphi 0, %s22
    %s39 = sphi 0, %s23
    %s45 = sphi 0, %s47
    %s48 = sphi 0, %s45
    %s49 = sphi 0, %s48
    %s65 = sphi 0, %s49
    %s69 = sphi 0, %s69
    %s71 = sphi 0, %s69
    %s72 = sphi 0, %s71
    %s86 = sphi 0, %s72
    %s92 = sphi 0, %s94
    %s95 = sphi 0, %s92
    %s96 = sphi 0, %s95
    %s112 = sphi 0, %s96
  $region4: #{bottleneck_forward.5} parent=0 // loop_header_branch
    %12 = sbr.rel (%p10) target = $region8
  $region5: #{bottleneck_forward.5} parent=0 // loop_body
    %s14 = ssub.s32 %s9, 1
    %s15 = ssub.s32 %s9, 2
    %s16 = sadd.s32 %s9, 1
    %s17 = ssub.s32 %s9, %s16
    %p18 = scmp.eq.s32.totalorder %s17, 0
    %s20 = sadd.s32 %s19, 1
    %s21 = scalar_select %p18, %s19, %s20
    %p24 = pneg %p18
    %p25 = scmp.eq.s32.totalorder %s9, 3
    %p26 = por %p24, %p25
    %p27 = scmp.ne.s32.totalorder %s19, %s22
    %p28 = scmp.eq.s32.totalorder %s9, 0
    %p29 = por %p27, %p28
    %p30 = scmp.ne.s32.totalorder %s19, %s22
    %p31 = scmp.eq.s32.totalorder %s14, 3
    %p32 = por %p30, %p31
    %p33 = scmp.ne.s32.totalorder %s22, %s23
    %p34 = scmp.eq.s32.totalorder %s14, 0
    %p35 = por %p33, %p34
    %p36 = scmp.ne.s32.totalorder %s22, %s23
    %p37 = scmp.eq.s32.totalorder %s15, 3
    %p38 = por %p36, %p37
    %p40 = scmp.ne.s32.totalorder %s23, %s39
    %p41 = scmp.eq.s32.totalorder %s15, 0
    %p42 = por %p40, %p41
    %s43 = ssub.s32 %s9, %s16
    %p44 = scmp.eq.s32.totalorder %s43, 0
    %s46 = sadd.s32 %s45, 1
    %s47 = scalar_select %p44, %s45, %s46
    %p50 = pneg %p44
    %p51 = scmp.eq.s32.totalorder %s9, 3
    %p52 = por %p50, %p51
    %p53 = scmp.ne.s32.totalorder %s45, %s48
    %p54 = scmp.eq.s32.totalorder %s9, 0
    %p55 = por %p53, %p54
    %p56 = scmp.ne.s32.totalorder %s45, %s48
    %p57 = scmp.eq.s32.totalorder %s14, 3
    %p58 = por %p56, %p57
    %p59 = scmp.ne.s32.totalorder %s48, %s49
    %p60 = scmp.eq.s32.totalorder %s14, 0
    %p61 = por %p59, %p60
    %p62 = scmp.ne.s32.totalorder %s48, %s49
    %p63 = scmp.eq.s32.totalorder %s15, 3
    %p64 = por %p62, %p63
    %p66 = scmp.ne.s32.totalorder %s49, %s65
    %p67 = scmp.eq.s32.totalorder %s15, 0
    %p68 = por %p66, %p67
    %s70 = sadd.s32 %s69, 1
    %p73 = scmp.eq.s32.totalorder %s9, 3
    %p74 = scmp.ne.s32.totalorder %s69, %s71
    %p75 = scmp.eq.s32.totalorder %s9, 0
    %p76 = por %p74, %p75
    %p77 = scmp.ne.s32.totalorder %s69, %s71
    %p78 = scmp.eq.s32.totalorder %s14, 3
    %p79 = por %p77, %p78
    %p80 = scmp.ne.s32.totalorder %s71, %s72
    %p81 = scmp.eq.s32.totalorder %s14, 0
    %p82 = por %p80, %p81
    %p83 = scmp.ne.s32.totalorder %s71, %s72
    %p84 = scmp.eq.s32.totalorder %s15, 3
    %p85 = por %p83, %p84
    %p87 = scmp.ne.s32.totalorder %s72, %s86
    %p88 = scmp.eq.s32.totalorder %s15, 0
    %p89 = por %p87, %p88
    %s90 = ssub.s32 %s9, %s16
    %p91 = scmp.eq.s32.totalorder %s90, 0
    %s93 = sadd.s32 %s92, 1
    %s94 = scalar_select %p91, %s92, %s93
    %p97 = pneg %p91
    %p98 = scmp.eq.s32.totalorder %s9, 3
    %p99 = por %p97, %p98
    %p100 = scmp.ne.s32.totalorder %s92, %s95
    %p101 = scmp.eq.s32.totalorder %s9, 0
    %p102 = por %p100, %p101
    %p103 = scmp.ne.s32.totalorder %s92, %s95
    %p104 = scmp.eq.s32.totalorder %s14, 3
    %p105 = por %p103, %p104
    %p106 = scmp.ne.s32.totalorder %s95, %s96
    %p107 = scmp.eq.s32.totalorder %s14, 0
    %p108 = por %p106, %p107
    %p109 = scmp.ne.s32.totalorder %s95, %s96
    %p110 = scmp.eq.s32.totalorder %s15, 3
    %p111 = por %p109, %p110
    %p113 = scmp.ne.s32.totalorder %s96, %s112
    %p114 = scmp.eq.s32.totalorder %s15, 0
    %p115 = por %p113, %p114
    %p116 = scmp.le.s32.totalorder 1, %s9
    %p117 = scmp.lt.s32.totalorder %s9, 5
    %p118 = pnand %p116, %p117
    %p119 = pneg %p118
    // Predicated region
    $region9: #{bottleneck_forward.5} parent=5 // pred_check
      _
    $region10: #{bottleneck_forward.5} parent=5 // pred_check_branch
      %121 = sbr.rel (%p118) target = $region12
    $region11: #{bottleneck_forward.5} parent=5 // pred_region
      %s122 = ssub.s32 %s9, 1
      // Predicated region
      $region13: #{bottleneck_forward.5} parent=11 // pred_check
        %p123 = pneg %p82
      $region14: #{bottleneck_forward.5} parent=11 // pred_check_branch
        %125 = sbr.rel (%p123) target = $region16
      $region15: #{bottleneck_forward.5} parent=11 // pred_region
        _
      $region16: #{bottleneck_forward.5} parent=11 // pred_fallthru
        _
    $region12: #{bottleneck_forward.5} parent=5 // pred_fallthru
      _
    %p126 = scmp.lt.s32.totalorder %s9, 4
    // Predicated region
    $region17: #{bottleneck_forward.5} parent=5 // pred_check
      %p127 = pneg %p126
    $region18: #{bottleneck_forward.5} parent=5 // pred_check_branch
      %129 = sbr.rel (%p127) target = $region20
    $region19: #{bottleneck_forward.5} parent=5 // pred_region
      // Predicated region
      $region21: #{bottleneck_forward.5} parent=19 // pred_check
        %p130 = pneg %p29
      $region22: #{bottleneck_forward.5} parent=19 // pred_check_branch
        %132 = sbr.rel (%p130) target = $region24
      $region23: #{bottleneck_forward.5} parent=19 // pred_region
        %p133 = scmp.lt.s32.totalorder %s9, 3
        %s134 = scalar_select %p133, %s9, 3
        %s135 = smul.addr %s134, 2
        %s136 = smul.addr %s135, 8
        %s137 = scalar_lea.vmem %s0, %s136
      $region24: #{bottleneck_forward.5} parent=19 // pred_fallthru
        _
      // Predicated region
      $region25: #{bottleneck_forward.5} parent=19 // pred_check
        %p138 = pneg %p55
      $region26: #{bottleneck_forward.5} parent=19 // pred_check_branch
        %140 = sbr.rel (%p138) target = $region28
      $region27: #{bottleneck_forward.5} parent=19 // pred_region
        %p141 = scmp.lt.s32.totalorder %s9, 3
        %s142 = scalar_select %p141, %s9, 3
        %s143 = smul.addr %s142, 2
        %s144 = smul.addr %s143, 8
        %s145 = scalar_lea.vmem %s1, %s144
      $region28: #{bottleneck_forward.5} parent=19 // pred_fallthru
        _
    $region20: #{bottleneck_forward.5} parent=5 // pred_fallthru
      _
    %p146 = scmp.le.s32.totalorder 1, %s9
    %p147 = scmp.lt.s32.totalorder %s9, 5
    %p148 = pnand %p146, %p147
    %p149 = pneg %p148
    // Predicated region
    $region29: #{bottleneck_forward.5} parent=5 // pred_check
      _
    $region30: #{bottleneck_forward.5} parent=5 // pred_check_branch
      %151 = sbr.rel (%p148) target = $region32
    $region31: #{bottleneck_forward.5} parent=5 // pred_region
      %s152 = ssub.s32 %s9, 1
      %p153 = scmp.lt.s32.totalorder %s14, 3
      %s154 = scalar_select %p153, %s14, 3
      %s155 = smul.addr %s154, 2
      %s156 = smul.addr %s155, 8
      %s157 = scalar_lea.vmem %s0, %s156
      %p158 = pneg %p35
      %p159 = pneg %p32
      %p160 = scmp.lt.s32.totalorder %s14, 3
      %s161 = scalar_select %p160, %s14, 3
      %s162 = smul.addr %s161, 2
      %s163 = smul.addr %s162, 8
      %s164 = scalar_lea.vmem %s1, %s163
      %p165 = pneg %p61
      %p166 = pneg %p58
      %p167 = pneg %p82
      %p168 = pneg %p79
      %p169 = pneg %p108
      %p170 = pneg %p105
      %p171 = scmp.lt.s32.totalorder %s14, 3
      %s172 = scalar_select %p171, %s14, 3
      %s173 = smul.addr %s172, 2
      %s174 = smul.addr %s173, 8
      %s175 = scalar_lea.vmem %s3, %s174
      %p176 = scmp.lt.s32.totalorder %s14, 3
      %s177 = scalar_select %p176, %s14, 3
      %s178 = smul.addr %s177, 2
      %s179 = smul.addr %s178, 8
      %s180 = scalar_lea.vmem %s0, %s179
      %p181 = scmp.lt.s32.totalorder %s14, 3
      %s182 = scalar_select %p181, %s14, 3
      %s183 = smul.addr %s182, 2
      %s184 = smul.addr %s183, 8
      %s185 = scalar_lea.vmem %s1, %s184
      %p186 = scmp.lt.s32.totalorder %s14, 3
      %s187 = scalar_select %p186, %s14, 3
      %s188 = smul.addr %s187, 2
      %s189 = smul.addr %s188, 8
      %s190 = scalar_lea.vmem %s3, %s189
      %v191 = vld [vmem:[%s180] sm:$0xff]
      %v192 = vld [vmem:[%s180 + $0x8] sm:$0xff]
      %v193 = vld [vmem:[%s2] ss:$2 sm:$0x3]
      %v195 = vlaneseq
      %v196 = vshrl.u32 %v195, 7
      %v197 = vsub.s32 0, %v196
      %v198 = vrot.slane %v193, %v197
      %v199 = vlaneseq
      %v200 = vshrl.u32 %v199, 7
      %v201 = vsub.s32 1, %v200
      %v202 = vrot.slane %v193, %v201
      %v205 = vmul.f32 %v191, %v198
      %v206 = vmul.f32 %v192, %v202
      %s207 = scalar_lea.vmem %s2, 1
      %v208 = vld [vmem:[%s207] ss:$2 sm:$0x3]
      %v210 = vlaneseq
      %v211 = vshrl.u32 %v210, 7
      %v212 = vsub.s32 0, %v211
      %v213 = vrot.slane %v208, %v212
      %v214 = vlaneseq
      %v215 = vshrl.u32 %v214, 7
      %v216 = vsub.s32 1, %v215
      %v217 = vrot.slane %v208, %v216
      %v220 = vadd.f32 %v205, %v213
      %v221 = vadd.f32 %v206, %v217
      %v222 = vxor.u32 %v220, 2147483648
      %v223 = vxor.u32 %v221, 2147483648
      %v224 = vmul.f32 %v222, 1.442695
      %v225 = vpow.pop %v224
      %v226 = vmul.f32 %v223, 1.442695
      %v227 = vpow.pop %v226
      %v228 = vadd.f32 %v225, 1.0
      %v229 = vadd.f32 %v227, 1.0
      %v230 = vrcp.pop %v228
      %v231 = vmul.f32 1.0, %v230
      %v232 = vrcp.pop %v229
      %v233 = vmul.f32 1.0, %v232
      %v234 = vmul.f32 %v220, %v231
      %v235 = vmul.f32 %v221, %v233
      %v236 = vld [vmem:[%s185] sm:$0xff]
      %v237 = vld [vmem:[%s185 + $0x8] sm:$0xff]
      %v238 = vadd.f32 %v236, %v234
      %v239 = vadd.f32 %v237, %v235
      %240 = vst [vmem:[%s190] sm:$0xff] %v238
      %241 = vst [vmem:[%s190 + $0x8] sm:$0xff] %v239
      %p242 = scmp.lt.s32.totalorder %s14, 3
      %s243 = scalar_select %p242, %s14, 3
      %s244 = smul.addr %s243, 2
      %s245 = smul.addr %s244, 8
      %s246 = scalar_lea.vmem %s3, %s245
      // Predicated region
      $region33: #{bottleneck_forward.5} parent=31 // pred_check
        %p247 = pneg %p105
      $region34: #{bottleneck_forward.5} parent=31 // pred_check_branch
        %249 = sbr.rel (%p247) target = $region36
      $region35: #{bottleneck_forward.5} parent=31 // pred_region
        _
      $region36: #{bottleneck_forward.5} parent=31 // pred_fallthru
        _
    $region32: #{bottleneck_forward.5} parent=5 // pred_fallthru
      _
    %p250 = scmp.le.s32.totalorder 2, %s9
    // Predicated region
    $region37: #{bottleneck_forward.5} parent=5 // pred_check
      %p251 = pneg %p250
    $region38: #{bottleneck_forward.5} parent=5 // pred_check_branch
      %253 = sbr.rel (%p251) target = $region40
    $region39: #{bottleneck_forward.5} parent=5 // pred_region
      %s254 = ssub.s32 %s9, 2
      // Predicated region
      $region41: #{bottleneck_forward.5} parent=39 // pred_check
        %p255 = pneg %p111
      $region42: #{bottleneck_forward.5} parent=39 // pred_check_branch
        %257 = sbr.rel (%p255) target = $region44
      $region43: #{bottleneck_forward.5} parent=39 // pred_region
        %p258 = scmp.lt.s32.totalorder %s15, 3
        %s259 = scalar_select %p258, %s15, 3
        %s260 = smul.addr %s259, 2
        %s261 = smul.addr %s260, 8
        %s262 = scalar_lea.vmem %s3, %s261
      $region44: #{bottleneck_forward.5} parent=39 // pred_fallthru
        _
    $region40: #{bottleneck_forward.5} parent=5 // pred_fallthru
      _
  $region6: #{bottleneck_forward.5} parent=0 // loop_footer
    %s13 = sadd.s32 1, %s9
  $region7: #{bottleneck_forward.5} parent=0 // loop_footer_branch
    %8 = sbr.rel target = $region3
  $region8: #{bottleneck_forward.5} parent=0 // loop_exit
    _

// kernel: bottleneck_forward.4
$region0: #{bottleneck_forward.4}
  #allocation0 [shape = 'u32[]', space=smem, size = 0x4, offset = 0x4, fixed_abs, tag = 'smem constant byte address 0x4 - core index']
  #allocation1 [shape = 'u32[144,128]{1,0:T(1,128)}', space=vmem, size = 0x12000, scoped, tag = 'internal scratch']
  %s0 = inlined_call_operand.vmem [shape: f32[2,16,128], index: 0, kind: input, shape index: {}]
  %s1 = inlined_call_operand.vmem [shape: f32[2,128], index: 1, kind: input, shape index: {}]
  %s2 = inlined_call_operand.vmem [shape: bf16[3,128,256], index: 2, kind: input, shape index: {}]
  %s3 = inlined_call_operand.vmem [shape: f32[2,16,256], index: 3, kind: output, shape index: {0}]
  %s4 = inlined_call_operand.vmem [shape: f32[2,256], index: 4, kind: output, shape index: {1}]
  %5 = xla_tuple %s3, %s4
  %s6 = sld [smem:[#allocation0]]
  $region57: #{bottleneck_forward.4} parent=0
    _
  %s8 = ssub.s32 1, %s6
  %s9 = scalar_select 0, %s8, %s6
  loop: start=0, step=1, limit=4
  $region2: #{bottleneck_forward.4} parent=0 // loop_pre_header
    _
  $region3: #{bottleneck_forward.4} parent=0 // loop_header
    %s11 = sphi 0, %s15
    %p12 = scmp.ge.s32.totalorder %s11, 4
    %s21 = sphi 0, %s23
    %s24 = sphi 0, %s21
    %s25 = sphi 0, %s24
    %s41 = sphi 0, %s25
    %s45 = sphi 0, %s45
    %s47 = sphi 0, %s45
    %s48 = sphi 0, %s47
    %s62 = sphi 0, %s48
    %s66 = sphi 0, %s66
    %s68 = sphi 0, %s66
    %s69 = sphi 0, %s68
    %s83 = sphi 0, %s69
    %s89 = sphi 0, %s91
    %s92 = sphi 0, %s89
    %s93 = sphi 0, %s92
    %s109 = sphi 0, %s93
    %s113 = sphi 0, %s113
    %s115 = sphi 0, %s113
    %s116 = sphi 0, %s115
    %s130 = sphi 0, %s116
  $region4: #{bottleneck_forward.4} parent=0 // loop_header_branch
    %14 = sbr.rel (%p12) target = $region8
  $region5: #{bottleneck_forward.4} parent=0 // loop_body
    %s16 = ssub.s32 %s11, 1
    %s17 = ssub.s32 %s11, 2
    %s18 = sadd.s32 %s11, 1
    %s19 = ssub.s32 %s11, %s18
    %p20 = scmp.eq.s32.totalorder %s19, 0
    %s22 = sadd.s32 %s21, 1
    %s23 = scalar_select %p20, %s21, %s22
    %p26 = pneg %p20
    %p27 = scmp.eq.s32.totalorder %s11, 1
    %p28 = por %p26, %p27
    %p29 = scmp.ne.s32.totalorder %s21, %s24
    %p30 = scmp.eq.s32.totalorder %s11, 0
    %p31 = por %p29, %p30
    %p32 = scmp.ne.s32.totalorder %s21, %s24
    %p33 = scmp.eq.s32.totalorder %s16, 1
    %p34 = por %p32, %p33
    %p35 = scmp.ne.s32.totalorder %s24, %s25
    %p36 = scmp.eq.s32.totalorder %s16, 0
    %p37 = por %p35, %p36
    %p38 = scmp.ne.s32.totalorder %s24, %s25
    %p39 = scmp.eq.s32.totalorder %s17, 1
    %p40 = por %p38, %p39
    %p42 = scmp.ne.s32.totalorder %s25, %s41
    %p43 = scmp.eq.s32.totalorder %s17, 0
    %p44 = por %p42, %p43
    %s46 = sadd.s32 %s45, 1
    %p49 = scmp.eq.s32.totalorder %s11, 1
    %p50 = scmp.ne.s32.totalorder %s45, %s47
    %p51 = scmp.eq.s32.totalorder %s11, 0
    %p52 = por %p50, %p51
    %p53 = scmp.ne.s32.totalorder %s45, %s47
    %p54 = scmp.eq.s32.totalorder %s16, 1
    %p55 = por %p53, %p54
    %p56 = scmp.ne.s32.totalorder %s47, %s48
    %p57 = scmp.eq.s32.totalorder %s16, 0
    %p58 = por %p56, %p57
    %p59 = scmp.ne.s32.totalorder %s47, %s48
    %p60 = scmp.eq.s32.totalorder %s17, 1
    %p61 = por %p59, %p60
    %p63 = scmp.ne.s32.totalorder %s48, %s62
    %p64 = scmp.eq.s32.totalorder %s17, 0
    %p65 = por %p63, %p64
    %s67 = sadd.s32 %s66, 1
    %p70 = scmp.eq.s32.totalorder %s11, 1
    %p71 = scmp.ne.s32.totalorder %s66, %s68
    %p72 = scmp.eq.s32.totalorder %s11, 0
    %p73 = por %p71, %p72
    %p74 = scmp.ne.s32.totalorder %s66, %s68
    %p75 = scmp.eq.s32.totalorder %s16, 1
    %p76 = por %p74, %p75
    %p77 = scmp.ne.s32.totalorder %s68, %s69
    %p78 = scmp.eq.s32.totalorder %s16, 0
    %p79 = por %p77, %p78
    %p80 = scmp.ne.s32.totalorder %s68, %s69
    %p81 = scmp.eq.s32.totalorder %s17, 1
    %p82 = por %p80, %p81
    %p84 = scmp.ne.s32.totalorder %s69, %s83
    %p85 = scmp.eq.s32.totalorder %s17, 0
    %p86 = por %p84, %p85
    %s87 = ssub.s32 %s11, %s18
    %p88 = scmp.eq.s32.totalorder %s87, 0
    %s90 = sadd.s32 %s89, 1
    %s91 = scalar_select %p88, %s89, %s90
    %p94 = pneg %p88
    %p95 = scmp.eq.s32.totalorder %s11, 1
    %p96 = por %p94, %p95
    %p97 = scmp.ne.s32.totalorder %s89, %s92
    %p98 = scmp.eq.s32.totalorder %s11, 0
    %p99 = por %p97, %p98
    %p100 = scmp.ne.s32.totalorder %s89, %s92
    %p101 = scmp.eq.s32.totalorder %s16, 1
    %p102 = por %p100, %p101
    %p103 = scmp.ne.s32.totalorder %s92, %s93
    %p104 = scmp.eq.s32.totalorder %s16, 0
    %p105 = por %p103, %p104
    %p106 = scmp.ne.s32.totalorder %s92, %s93
    %p107 = scmp.eq.s32.totalorder %s17, 1
    %p108 = por %p106, %p107
    %p110 = scmp.ne.s32.totalorder %s93, %s109
    %p111 = scmp.eq.s32.totalorder %s17, 0
    %p112 = por %p110, %p111
    %s114 = sadd.s32 %s113, 1
    %p117 = scmp.eq.s32.totalorder %s11, 1
    %p118 = scmp.ne.s32.totalorder %s113, %s115
    %p119 = scmp.eq.s32.totalorder %s11, 0
    %p120 = por %p118, %p119
    %p121 = scmp.ne.s32.totalorder %s113, %s115
    %p122 = scmp.eq.s32.totalorder %s16, 1
    %p123 = por %p121, %p122
    %p124 = scmp.ne.s32.totalorder %s115, %s116
    %p125 = scmp.eq.s32.totalorder %s16, 0
    %p126 = por %p124, %p125
    %p127 = scmp.ne.s32.totalorder %s115, %s116
    %p128 = scmp.eq.s32.totalorder %s17, 1
    %p129 = por %p127, %p128
    %p131 = scmp.ne.s32.totalorder %s116, %s130
    %p132 = scmp.eq.s32.totalorder %s17, 0
    %p133 = por %p131, %p132
    %p134 = scmp.le.s32.totalorder 1, %s11
    %p135 = scmp.lt.s32.totalorder %s11, 3
    %p136 = pnand %p134, %p135
    %p137 = pneg %p136
    // Predicated region
    $region9: #{bottleneck_forward.4} parent=5 // pred_check
      _
    $region10: #{bottleneck_forward.4} parent=5 // pred_check_branch
      %139 = sbr.rel (%p136) target = $region12
    $region11: #{bottleneck_forward.4} parent=5 // pred_region
      %s140 = ssub.s32 %s11, 1
      // Predicated region
      $region13: #{bottleneck_forward.4} parent=11 // pred_check
        %p141 = pneg %p58
      $region14: #{bottleneck_forward.4} parent=11 // pred_check_branch
        %143 = sbr.rel (%p141) target = $region16
      $region15: #{bottleneck_forward.4} parent=11 // pred_region
        _
      $region16: #{bottleneck_forward.4} parent=11 // pred_fallthru
        _
      // Predicated region
      $region17: #{bottleneck_forward.4} parent=11 // pred_check
        %p144 = pneg %p79
      $region18: #{bottleneck_forward.4} parent=11 // pred_check_branch
        %146 = sbr.rel (%p144) target = $region20
      $region19: #{bottleneck_forward.4} parent=11 // pred_region
        _
      $region20: #{bottleneck_forward.4} parent=11 // pred_fallthru
        _
    $region12: #{bottleneck_forward.4} parent=5 // pred_fallthru
      _
    %p147 = scmp.lt.s32.totalorder %s11, 2
    // Predicated region
    $region21: #{bottleneck_forward.4} parent=5 // pred_check
      %p148 = pneg %p147
    $region22: #{bottleneck_forward.4} parent=5 // pred_check_branch
      %150 = sbr.rel (%p148) target = $region24
    $region23: #{bottleneck_forward.4} parent=5 // pred_region
      // Predicated region
      $region25: #{bottleneck_forward.4} parent=23 // pred_check
        %p151 = pneg %p31
      $region26: #{bottleneck_forward.4} parent=23 // pred_check_branch
        %153 = sbr.rel (%p151) target = $region28
      $region27: #{bottleneck_forward.4} parent=23 // pred_region
        %p154 = scmp.lt.s32.totalorder %s11, 1
        %s155 = scalar_select %p154, %s11, 1
        %s156 = smul.addr %s155, 2
        %s157 = smul.addr %s156, 8
        %s158 = scalar_lea.vmem %s0, %s157
      $region28: #{bottleneck_forward.4} parent=23 // pred_fallthru
        _
    $region24: #{bottleneck_forward.4} parent=5 // pred_fallthru
      _
    %p159 = scmp.le.s32.totalorder 1, %s11
    %p160 = scmp.lt.s32.totalorder %s11, 3
    %p161 = pnand %p159, %p160
    %p162 = pneg %p161
    // Predicated region
    $region29: #{bottleneck_forward.4} parent=5 // pred_check
      _
    $region30: #{bottleneck_forward.4} parent=5 // pred_check_branch
      %164 = sbr.rel (%p161) target = $region32
    $region31: #{bottleneck_forward.4} parent=5 // pred_region
      %s165 = ssub.s32 %s11, 1
      %p166 = scmp.lt.s32.totalorder %s16, 1
      %s167 = scalar_select %p166, %s16, 1
      %s168 = smul.addr %s167, 2
      %s169 = smul.addr %s168, 8
      %s170 = scalar_lea.vmem %s0, %s169
      %p171 = pneg %p37
      %p172 = pneg %p34
      %p173 = pneg %p58
      %p174 = pneg %p55
      %p175 = pneg %p79
      %p176 = pneg %p76
      %p177 = pneg %p105
      %p178 = pneg %p102
      %p179 = scmp.lt.s32.totalorder %s16, 1
      %s180 = scalar_select %p179, %s16, 1
      %s181 = smul.addr %s180, 4
      %s182 = smul.addr %s181, 8
      %s183 = scalar_lea.vmem %s3, %s182
      %p184 = pneg %p126
      %p185 = pneg %p123
      %p186 = scmp.lt.s32.totalorder %s16, 1
      %s187 = scalar_select %p186, %s16, 1
      %s188 = smul.addr %s187, 2
      %s189 = smul.addr %s188, 8
      %s190 = scalar_lea.vmem %s0, %s189
      %p191 = scmp.lt.s32.totalorder %s16, 1
      %s192 = scalar_select %p191, %s16, 1
      %s193 = smul.addr %s192, 4
      %s194 = smul.addr %s193, 8
      %s195 = scalar_lea.vmem %s3, %s194
      %v197 = vld [vmem:[%s190] sm:$0xff]
      %v198 = vld [vmem:[%s190 + $0x8] sm:$0xff]
      %v199 = vld [vmem:[%s1] sm:$0x1]
      %v200 = vlaneseq
      %v201 = vshrl.u32 %v200, 7
      %v202 = vsub.s32 0, %v201
      %v203 = vrot.slane %v199, %v202
      %v204 = vmul.f32 %v197, %v203
      %v205 = vmul.f32 %v198, %v203
      %v206 = vld [vmem:[%s1 + $0x1] sm:$0x1]
      %v207 = vlaneseq
      %v208 = vshrl.u32 %v207, 7
      %v209 = vsub.s32 0, %v208
      %v210 = vrot.slane %v206, %v209
      %v211 = vadd.f32 %v204, %v210
      %v212 = vadd.f32 %v205, %v210
      %v213 = vxor.u32 %v211, 2147483648
      %v214 = vxor.u32 %v212, 2147483648
      %v215 = vmul.f32 %v213, 1.442695
      %v216 = vpow.pop %v215
      %v217 = vmul.f32 %v214, 1.442695
      %v218 = vpow.pop %v217
      %v219 = vadd.f32 %v216, 1.0
      %v220 = vadd.f32 %v218, 1.0
      %v221 = vrcp.pop %v219
      %v222 = vmul.f32 1.0, %v221
      %v223 = vrcp.pop %v220
      %v224 = vmul.f32 1.0, %v223
      %v225 = vmul.f32 %v211, %v222
      %v226 = vmul.f32 %v212, %v224
      %vm229 = vcmask 1040384
      %v230 = vrot.slane %v225, 7
      %v231 = vrot.slane %v226, 7
      %v232 = vsel %vm229, %v230, %v231
      %v235 = vsel %vm229, 0.0, %v230
      %vm236 = vcmask 1046528
      %v237 = vrot.slane %v225, 1
      %v238 = vrot.slane %v226, 1
      %v239 = vsel %vm236, %v237, %v238
      %v242 = vsel %vm236, %v238, 0.0
      %v243 = vpack.c.bf16 %v232, %v235
      %v244 = vld [vmem:[%s2] sm:$0xff]
      %v245 = vld [vmem:[%s2 + $0x8] sm:$0xff]
      %v246 = vld [vmem:[%s2 + $0x10] sm:$0xff]
      %v247 = vld [vmem:[%s2 + $0x18] sm:$0xff]
      %v248 = vld [vmem:[%s2 + $0x20] sm:$0xff]
      %v249 = vld [vmem:[%s2 + $0x28] sm:$0xff]
      %v250 = vld [vmem:[%s2 + $0x30] sm:$0xff]
      %v251 = vld [vmem:[%s2 + $0x38] sm:$0xff]
      %v252 = vld [vmem:[%s2 + $0x40] sm:$0xff]
      %v253 = vld [vmem:[%s2 + $0x48] sm:$0xff]
      %v254 = vld [vmem:[%s2 + $0x50] sm:$0xff]
      %v255 = vld [vmem:[%s2 + $0x58] sm:$0xff]
      %v256 = vld [vmem:[%s2 + $0x60] sm:$0xff]
      %v257 = vld [vmem:[%s2 + $0x68] sm:$0xff]
      %v258 = vld [vmem:[%s2 + $0x70] sm:$0xff]
      %v259 = vld [vmem:[%s2 + $0x78] sm:$0xff]
      %v260 = vpack.c.bf16 %v226, %v225
      %s261 = scalar_lea.vmem %s2, 128
      %v262 = vld [vmem:[%s261] sm:$0xff]
      %v263 = vld [vmem:[%s261 + $0x8] sm:$0xff]
      %v264 = vld [vmem:[%s261 + $0x10] sm:$0xff]
      %v265 = vld [vmem:[%s261 + $0x18] sm:$0xff]
      %v266 = vld [vmem:[%s261 + $0x20] sm:$0xff]
      %v267 = vld [vmem:[%s261 + $0x28] sm:$0xff]
      %v268 = vld [vmem:[%s261 + $0x30] sm:$0xff]
      %v269 = vld [vmem:[%s261 + $0x38] sm:$0xff]
      %v270 = vld [vmem:[%s261 + $0x40] sm:$0xff]
      %v271 = vld [vmem:[%s261 + $0x48] sm:$0xff]
      %v272 = vld [vmem:[%s261 + $0x50] sm:$0xff]
      %v273 = vld [vmem:[%s261 + $0x58] sm:$0xff]
      %v274 = vld [vmem:[%s261 + $0x60] sm:$0xff]
      %v275 = vld [vmem:[%s261 + $0x68] sm:$0xff]
      %v276 = vld [vmem:[%s261 + $0x70] sm:$0xff]
      %v277 = vld [vmem:[%s261 + $0x78] sm:$0xff]
      %v294 = vunpack.c.l.b16 %v262
      %v295 = vunpack.c.h.b16 %v262
      %v296 = vunpack.c.l.b16 %v263
      %v297 = vunpack.c.h.b16 %v263
      %v298 = vunpack.c.l.b16 %v264
      %v299 = vunpack.c.h.b16 %v264
      %v300 = vunpack.c.l.b16 %v265
      %v301 = vunpack.c.h.b16 %v265
      %v302 = vunpack.c.l.b16 %v266
      %v303 = vunpack.c.h.b16 %v266
      %v304 = vunpack.c.l.b16 %v267
      %v305 = vunpack.c.h.b16 %v267
      %v306 = vunpack.c.l.b16 %v268
      %v307 = vunpack.c.h.b16 %v268
      %v308 = vunpack.c.l.b16 %v269
      %v309 = vunpack.c.h.b16 %v269
      %v310 = vunpack.c.l.b16 %v270
      %v311 = vunpack.c.h.b16 %v270
      %v312 = vunpack.c.l.b16 %v271
      %v313 = vunpack.c.h.b16 %v271
      %v314 = vunpack.c.l.b16 %v272
      %v315 = vunpack.c.h.b16 %v272
      %v316 = vunpack.c.l.b16 %v273
      %v317 = vunpack.c.h.b16 %v273
      %v318 = vunpack.c.l.b16 %v274
      %v319 = vunpack.c.h.b16 %v274
      %v320 = vunpack.c.l.b16 %v275
      %v321 = vunpack.c.h.b16 %v275
      %v322 = vunpack.c.l.b16 %v276
      %v323 = vunpack.c.h.b16 %v276
      %v324 = vunpack.c.l.b16 %v277
      %v325 = vunpack.c.h.b16 %v277
      %v326 = vpack.c.b16 %v296, %v294
      %v327 = vpack.c.b16 %v297, %v295
      %v328 = vpack.c.b16 %v300, %v298
      %v329 = vpack.c.b16 %v301, %v299
      %v330 = vpack.c.b16 %v304, %v302
      %v331 = vpack.c.b16 %v305, %v303
      %v332 = vpack.c.b16 %v308, %v306
      %v333 = vpack.c.b16 %v309, %v307
      %v334 = vpack.c.b16 %v312, %v310
      %v335 = vpack.c.b16 %v313, %v311
      %v336 = vpack.c.b16 %v316, %v314
      %v337 = vpack.c.b16 %v317, %v315
      %v338 = vpack.c.b16 %v320, %v318
      %v339 = vpack.c.b16 %v321, %v319
      %v340 = vpack.c.b16 %v324, %v322
      %v341 = vpack.c.b16 %v325, %v323
      %358 = vmatprep.subr.bf16.mxu0 %v341
      %359 = vmatpush1.bf16.msra.mxu0 %v340
      %360 = vmatprep.subr.bf16.mxu0 %v339
      %361 = vmatpush1.bf16.msra.mxu0 %v338
      %362 = vmatprep.subr.bf16.mxu0 %v337
      %363 = vmatpush1.bf16.msra.mxu0 %v336
      %364 = vmatprep.subr.bf16.mxu0 %v335
      %365 = vmatpush1.bf16.msra.mxu0 %v334
      %366 = vmatprep.subr.bf16.mxu0 %v333
      %367 = vmatpush1.bf16.msra.mxu0 %v332
      %368 = vmatprep.subr.bf16.mxu0 %v331
      %369 = vmatpush1.bf16.msra.mxu0 %v330
      %370 = vmatprep.subr.bf16.mxu0 %v329
      %371 = vmatpush1.bf16.msra.mxu0 %v328
      %372 = vmatprep.subr.bf16.mxu0 %v327
      %373 = vmatpush1.bf16.msra.mxu0 %v326
      %374 = vmatprep.subr.bf16.mxu0 0
      %375 = vmatpush2.bf16.msra.mxu0 0
      %376 = vmatprep.subr.bf16.mxu0 0
      %377 = vmatpush2.bf16.msra.mxu0 0
      %378 = vmatprep.subr.bf16.mxu0 0
      %379 = vmatpush2.bf16.msra.mxu0 0
      %380 = vmatprep.subr.bf16.mxu0 0
      %381 = vmatpush2.bf16.msra.mxu0 0
      %382 = vmatprep.subr.bf16.mxu0 0
      %383 = vmatpush2.bf16.msra.mxu0 0
      %384 = vmatprep.subr.bf16.mxu0 0
      %385 = vmatpush2.bf16.msra.mxu0 0
      %386 = vmatprep.subr.bf16.mxu0 0
      %387 = vmatpush2.bf16.msra.mxu0 0
      %388 = vmatprep.subr.bf16.mxu0 0
      %389 = vmatpush2.bf16.msra.mxu0 0
      %390 = vmatprep.mubr.bf16.mxu0 0
      %391 = vmatmul.mubr.bf16.gmra.mxu0 %v260
      %v392 = vpop.f32.mrf.mxu0
      %v393 = vadd.f32 0.0, %v392
      %v394 = vpop.f32.mrf.mxu0
      %v395 = vadd.f32 0.0, %v394
      %v396 = vpop.f32.mrf.mxu0
      %v397 = vadd.f32 0.0, %v396
      %v398 = vpop.f32.mrf.mxu0
      %v399 = vadd.f32 0.0, %v398
      %400 = vdwg.mxu0
      %v417 = vunpack.c.l.b16 %v244
      %v418 = vunpack.c.h.b16 %v244
      %v419 = vunpack.c.l.b16 %v245
      %v420 = vunpack.c.h.b16 %v245
      %v421 = vunpack.c.l.b16 %v246
      %v422 = vunpack.c.h.b16 %v246
      %v423 = vunpack.c.l.b16 %v247
      %v424 = vunpack.c.h.b16 %v247
      %v425 = vunpack.c.l.b16 %v248
      %v426 = vunpack.c.h.b16 %v248
      %v427 = vunpack.c.l.b16 %v249
      %v428 = vunpack.c.h.b16 %v249
      %v429 = vunpack.c.l.b16 %v250
      %v430 = vunpack.c.h.b16 %v250
      %v431 = vunpack.c.l.b16 %v251
      %v432 = vunpack.c.h.b16 %v251
      %v433 = vunpack.c.l.b16 %v252
      %v434 = vunpack.c.h.b16 %v252
      %v435 = vunpack.c.l.b16 %v253
      %v436 = vunpack.c.h.b16 %v253
      %v437 = vunpack.c.l.b16 %v254
      %v438 = vunpack.c.h.b16 %v254
      %v439 = vunpack.c.l.b16 %v255
      %v440 = vunpack.c.h.b16 %v255
      %v441 = vunpack.c.l.b16 %v256
      %v442 = vunpack.c.h.b16 %v256
      %v443 = vunpack.c.l.b16 %v257
      %v444 = vunpack.c.h.b16 %v257
      %v445 = vunpack.c.l.b16 %v258
      %v446 = vunpack.c.h.b16 %v258
      %v447 = vunpack.c.l.b16 %v259
      %v448 = vunpack.c.h.b16 %v259
      %v449 = vpack.c.b16 %v419, %v417
      %v450 = vpack.c.b16 %v420, %v418
      %v451 = vpack.c.b16 %v423, %v421
      %v452 = vpack.c.b16 %v424, %v422
      %v453 = vpack.c.b16 %v427, %v425
      %v454 = vpack.c.b16 %v428, %v426
      %v455 = vpack.c.b16 %v431, %v429
      %v456 = vpack.c.b16 %v432, %v430
      %v457 = vpack.c.b16 %v435, %v433
      %v458 = vpack.c.b16 %v436, %v434
      %v459 = vpack.c.b16 %v439, %v437
      %v460 = vpack.c.b16 %v440, %v438
      %v461 = vpack.c.b16 %v443, %v441
      %v462 = vpack.c.b16 %v444, %v442
      %v463 = vpack.c.b16 %v447, %v445
      %v464 = vpack.c.b16 %v448, %v446
      %481 = vmatprep.subr.bf16.mxu0 %v464
      %482 = vmatpush1.bf16.msra.mxu0 %v463
      %483 = vmatprep.subr.bf16.mxu0 %v462
      %484 = vmatpush1.bf16.msra.mxu0 %v461
      %485 = vmatprep.subr.bf16.mxu0 %v460
      %486 = vmatpush1.bf16.msra.mxu0 %v459
      %487 = vmatprep.subr.bf16.mxu0 %v458
      %488 = vmatpush1.bf16.msra.mxu0 %v457
      %489 = vmatprep.subr.bf16.mxu0 %v456
      %490 = vmatpush1.bf16.msra.mxu0 %v455
      %491 = vmatprep.subr.bf16.mxu0 %v454
      %492 = vmatpush1.bf16.msra.mxu0 %v453
      %493 = vmatprep.subr.bf16.mxu0 %v452
      %494 = vmatpush1.bf16.msra.mxu0 %v451
      %495 = vmatprep.subr.bf16.mxu0 %v450
      %496 = vmatpush1.bf16.msra.mxu0 %v449
      %497 = vmatprep.subr.bf16.mxu0 0
      %498 = vmatpush2.bf16.msra.mxu0 0
      %499 = vmatprep.subr.bf16.mxu0 0
      %500 = vmatpush2.bf16.msra.mxu0 0
      %501 = vmatprep.subr.bf16.mxu0 0
      %502 = vmatpush2.bf16.msra.mxu0 0
      %503 = vmatprep.subr.bf16.mxu0 0
      %504 = vmatpush2.bf16.msra.mxu0 0
      %505 = vmatprep.subr.bf16.mxu0 0
      %506 = vmatpush2.bf16.msra.mxu0 0
      %507 = vmatprep.subr.bf16.mxu0 0
      %508 = vmatpush2.bf16.msra.mxu0 0
      %509 = vmatprep.subr.bf16.mxu0 0
      %510 = vmatpush2.bf16.msra.mxu0 0
      %511 = vmatprep.subr.bf16.mxu0 0
      %512 = vmatpush2.bf16.msra.mxu0 0
      %513 = vmatprep.mubr.bf16.mxu0 0
      %514 = vmatmul.mubr.bf16.gmra.mxu0 %v243
      %v515 = vpop.f32.mrf.mxu0
      %v516 = vadd.f32 %v393, %v515
      %v517 = vpop.f32.mrf.mxu0
      %v518 = vadd.f32 %v395, %v517
      %v519 = vpop.f32.mrf.mxu0
      %v520 = vadd.f32 %v397, %v519
      %v521 = vpop.f32.mrf.mxu0
      %v522 = vadd.f32 %v399, %v521
      %523 = vdwg.mxu0
      %v524 = vpack.c.bf16 %v242, %v239
      %s525 = scalar_lea.vmem %s2, 256
      %v526 = vld [vmem:[%s525] sm:$0xff]
      %v527 = vld [vmem:[%s525 + $0x8] sm:$0xff]
      %v528 = vld [vmem:[%s525 + $0x10] sm:$0xff]
      %v529 = vld [vmem:[%s525 + $0x18] sm:$0xff]
      %v530 = vld [vmem:[%s525 + $0x20] sm:$0xff]
      %v531 = vld [vmem:[%s525 + $0x28] sm:$0xff]
      %v532 = vld [vmem:[%s525 + $0x30] sm:$0xff]
      %v533 = vld [vmem:[%s525 + $0x38] sm:$0xff]
      %v534 = vld [vmem:[%s525 + $0x40] sm:$0xff]
      %v535 = vld [vmem:[%s525 + $0x48] sm:$0xff]
      %v536 = vld [vmem:[%s525 + $0x50] sm:$0xff]
      %v537 = vld [vmem:[%s525 + $0x58] sm:$0xff]
      %v538 = vld [vmem:[%s525 + $0x60] sm:$0xff]
      %v539 = vld [vmem:[%s525 + $0x68] sm:$0xff]
      %v540 = vld [vmem:[%s525 + $0x70] sm:$0xff]
      %v541 = vld [vmem:[%s525 + $0x78] sm:$0xff]
      %v558 = vunpack.c.l.b16 %v526
      %v559 = vunpack.c.h.b16 %v526
      %v560 = vunpack.c.l.b16 %v527
      %v561 = vunpack.c.h.b16 %v527
      %v562 = vunpack.c.l.b16 %v528
      %v563 = vunpack.c.h.b16 %v528
      %v564 = vunpack.c.l.b16 %v529
      %v565 = vunpack.c.h.b16 %v529
      %v566 = vunpack.c.l.b16 %v530
      %v567 = vunpack.c.h.b16 %v530
      %v568 = vunpack.c.l.b16 %v531
      %v569 = vunpack.c.h.b16 %v531
      %v570 = vunpack.c.l.b16 %v532
      %v571 = vunpack.c.h.b16 %v532
      %v572 = vunpack.c.l.b16 %v533
      %v573 = vunpack.c.h.b16 %v533
      %v574 = vunpack.c.l.b16 %v534
      %v575 = vunpack.c.h.b16 %v534
      %v576 = vunpack.c.l.b16 %v535
      %v577 = vunpack.c.h.b16 %v535
      %v578 = vunpack.c.l.b16 %v536
      %v579 = vunpack.c.h.b16 %v536
      %v580 = vunpack.c.l.b16 %v537
      %v581 = vunpack.c.h.b16 %v537
      %v582 = vunpack.c.l.b16 %v538
      %v583 = vunpack.c.h.b16 %v538
      %v584 = vunpack.c.l.b16 %v539
      %v585 = vunpack.c.h.b16 %v539
      %v586 = vunpack.c.l.b16 %v540
      %v587 = vunpack.c.h.b16 %v540
      %v588 = vunpack.c.l.b16 %v541
      %v589 = vunpack.c.h.b16 %v541
      %v590 = vpack.c.b16 %v560, %v558
      %v591 = vpack.c.b16 %v561, %v559
      %v592 = vpack.c.b16 %v564, %v562
      %v593 = vpack.c.b16 %v565, %v563
      %v594 = vpack.c.b16 %v568, %v566
      %v595 = vpack.c.b16 %v569, %v567
      %v596 = vpack.c.b16 %v572, %v570
      %v597 = vpack.c.b16 %v573, %v571
      %v598 = vpack.c.b16 %v576, %v574
      %v599 = vpack.c.b16 %v577, %v575
      %v600 = vpack.c.b16 %v580, %v578
      %v601 = vpack.c.b16 %v581, %v579
      %v602 = vpack.c.b16 %v584, %v582
      %v603 = vpack.c.b16 %v585, %v583
      %v604 = vpack.c.b16 %v588, %v586
      %v605 = vpack.c.b16 %v589, %v587
      %622 = vmatprep.subr.bf16.mxu0 %v605
      %623 = vmatpush1.bf16.msra.mxu0 %v604
      %624 = vmatprep.subr.bf16.mxu0 %v603
      %625 = vmatpush1.bf16.msra.mxu0 %v602
      %626 = vmatprep.subr.bf16.mxu0 %v601
      %627 = vmatpush1.bf16.msra.mxu0 %v600
      %628 = vmatprep.subr.bf16.mxu0 %v599
      %629 = vmatpush1.bf16.msra.mxu0 %v598
      %630 = vmatprep.subr.bf16.mxu0 %v597
      %631 = vmatpush1.bf16.msra.mxu0 %v596
      %632 = vmatprep.subr.bf16.mxu0 %v595
      %633 = vmatpush1.bf16.msra.mxu0 %v594
      %634 = vmatprep.subr.bf16.mxu0 %v593
      %635 = vmatpush1.bf16.msra.mxu0 %v592
      %636 = vmatprep.subr.bf16.mxu0 %v591
      %637 = vmatpush1.bf16.msra.mxu0 %v590
      %638 = vmatprep.subr.bf16.mxu0 0
      %639 = vmatpush2.bf16.msra.mxu0 0
      %640 = vmatprep.subr.bf16.mxu0 0
      %641 = vmatpush2.bf16.msra.mxu0 0
      %642 = vmatprep.subr.bf16.mxu0 0
      %643 = vmatpush2.bf16.msra.mxu0 0
      %644 = vmatprep.subr.bf16.mxu0 0
      %645 = vmatpush2.bf16.msra.mxu0 0
      %646 = vmatprep.subr.bf16.mxu0 0
      %647 = vmatpush2.bf16.msra.mxu0 0
      %648 = vmatprep.subr.bf16.mxu0 0
      %649 = vmatpush2.bf16.msra.mxu0 0
      %650 = vmatprep.subr.bf16.mxu0 0
      %651 = vmatpush2.bf16.msra.mxu0 0
      %652 = vmatprep.subr.bf16.mxu0 0
      %653 = vmatpush2.bf16.msra.mxu0 0
      %654 = vmatprep.mubr.bf16.mxu0 0
      %655 = vmatmul.mubr.bf16.gmra.mxu0 %v524
      %v656 = vpop.f32.mrf.mxu0
      %v657 = vadd.f32 0.0, %v656
      %v658 = vpop.f32.mrf.mxu0
      %v659 = vadd.f32 0.0, %v658
      %v660 = vpop.f32.mrf.mxu0
      %v661 = vadd.f32 0.0, %v660
      %v662 = vpop.f32.mrf.mxu0
      %v663 = vadd.f32 0.0, %v662
      %664 = vdwg.mxu0
      %v665 = vadd.f32 %v516, %v657
      %v666 = vadd.f32 %v518, %v659
      %v667 = vadd.f32 %v520, %v661
      %v668 = vadd.f32 %v522, %v663
      %669 = vst [vmem:[%s195] sm:$0xff] %v665
      %670 = vst [vmem:[%s195 + $0x8] sm:$0xff] %v666
      %671 = vst [vmem:[%s195 + $0x10] sm:$0xff] %v667
      %672 = vst [vmem:[%s195 + $0x18] sm:$0xff] %v668
      %v673 = vadd.f32 %v665, %v667
      %v674 = vrot.slane %v673, 4
      %v675 = vadd.f32 %v673, %v674
      %v676 = vrot.slane %v675, 2
      %v677 = vadd.f32 %v675, %v676
      %v678 = vrot.slane %v677, 1
      %v679 = vadd.f32 %v677, %v678
      %v680 = vadd.f32 %v666, %v668
      %v681 = vrot.slane %v680, 4
      %v682 = vadd.f32 %v680, %v681
      %v683 = vrot.slane %v682, 2
      %v684 = vadd.f32 %v682, %v683
      %v685 = vrot.slane %v684, 1
      %v686 = vadd.f32 %v684, %v685
      %v687 = vmul.f32 %v665, %v665
      %v688 = vmul.f32 %v666, %v666
      %v689 = vmul.f32 %v667, %v667
      %v690 = vmul.f32 %v668, %v668
      %v691 = vadd.f32 %v687, %v689
      %v692 = vrot.slane %v691, 4
      %v693 = vadd.f32 %v691, %v692
      %v694 = vrot.slane %v693, 2
      %v695 = vadd.f32 %v693, %v694
      %v696 = vrot.slane %v695, 1
      %v697 = vadd.f32 %v695, %v696
      %v698 = vadd.f32 %v688, %v690
      %v699 = vrot.slane %v698, 4
      %v700 = vadd.f32 %v698, %v699
      %v701 = vrot.slane %v700, 2
      %v702 = vadd.f32 %v700, %v701
      %v703 = vrot.slane %v702, 1
      %v704 = vadd.f32 %v702, %v703
      %v705 = vsel %vm229, %v679, %v697
      %v706 = vsel %vm229, %v686, %v704
      %p707 = scmp.eq.s32.totalorder %s16, 0
      // Predicated region
      $region33: #{bottleneck_forward.4} parent=31 // pred_check
        %p708 = pneg %p707
      $region34: #{bottleneck_forward.4} parent=31 // pred_check_branch
        %710 = sbr.rel (%p708) target = $region36
      $region35: #{bottleneck_forward.4} parent=31 // pred_region
        %711 = vst [vmem:[%s4] sm:$0xf] 0.0
      $region36: #{bottleneck_forward.4} parent=31 // pred_fallthru
        _
      %v712 = vld [vmem:[%s4] sm:$0xf]
      %v715 = vcombine.low %v705, %v706
      %v717 = vunpack.c.l.s4 1983009808
      %v718 = vunpack.c.0.s8 %v717
      %v719 = vlaneseq
      %v720 = vshrl.u32 %v719, 7
      %v721 = vsub.s32 %v718, %v720
      %v722 = vrot.slane %v715, %v721
      %v724 = vadd.f32 %v712, %v722
      %725 = vst [vmem:[%s4] sm:$0xf] %v724
      %p726 = scmp.lt.s32.totalorder %s16, 1
      %s727 = scalar_select %p726, %s16, 1
      %s728 = smul.addr %s727, 4
      %s729 = smul.addr %s728, 8
      %s730 = scalar_lea.vmem %s3, %s729
      // Predicated region
      $region37: #{bottleneck_forward.4} parent=31 // pred_check
        %p731 = pneg %p102
      $region38: #{bottleneck_forward.4} parent=31 // pred_check_branch
        %733 = sbr.rel (%p731) target = $region40
      $region39: #{bottleneck_forward.4} parent=31 // pred_region
        _
      $region40: #{bottleneck_forward.4} parent=31 // pred_fallthru
        _
      // Predicated region
      $region41: #{bottleneck_forward.4} parent=31 // pred_check
        %p734 = pneg %p123
      $region42: #{bottleneck_forward.4} parent=31 // pred_check_branch
        %736 = sbr.rel (%p734) target = $region44
      $region43: #{bottleneck_forward.4} parent=31 // pred_region
        _
      $region44: #{bottleneck_forward.4} parent=31 // pred_fallthru
        _
      // Predicated region
      $region45: #{bottleneck_forward.4} parent=31 // pred_check
        %p737 = pneg %p123
      $region46: #{bottleneck_forward.4} parent=31 // pred_check_branch
        %739 = sbr.rel (%p737) target = $region48
      $region47: #{bottleneck_forward.4} parent=31 // pred_region
        _
      $region48: #{bottleneck_forward.4} parent=31 // pred_fallthru
        _
    $region32: #{bottleneck_forward.4} parent=5 // pred_fallthru
      _
    %p740 = scmp.le.s32.totalorder 2, %s11
    // Predicated region
    $region49: #{bottleneck_forward.4} parent=5 // pred_check
      %p741 = pneg %p740
    $region50: #{bottleneck_forward.4} parent=5 // pred_check_branch
      %743 = sbr.rel (%p741) target = $region52
    $region51: #{bottleneck_forward.4} parent=5 // pred_region
      %s744 = ssub.s32 %s11, 2
      // Predicated region
      $region53: #{bottleneck_forward.4} parent=51 // pred_check
        %p745 = pneg %p108
      $region54: #{bottleneck_forward.4} parent=51 // pred_check_branch
        %747 = sbr.rel (%p745) target = $region56
      $region55: #{bottleneck_forward.4} parent=51 // pred_region
        %p748 = scmp.lt.s32.totalorder %s17, 1
        %s749 = scalar_select %p748, %s17, 1
        %s750 = smul.addr %s749, 4
        %s751 = smul.addr %s750, 8
        %s752 = scalar_lea.vmem %s3, %s751
      $region56: #{bottleneck_forward.4} parent=51 // pred_fallthru
        _
    $region52: #{bottleneck_forward.4} parent=5 // pred_fallthru
      _
  $region6: #{bottleneck_forward.4} parent=0 // loop_footer
    %s15 = sadd.s32 1, %s11
  $region7: #{bottleneck_forward.4} parent=0 // loop_footer_branch
    %10 = sbr.rel target = $region3
  $region8: #{bottleneck_forward.4} parent=0 // loop_exit
    _

// kernel: bottleneck_forward.3
$region0: #{bottleneck_forward.3}
  #allocation0 [shape = 'u32[]', space=smem, size = 0x4, offset = 0x4, fixed_abs, tag = 'smem constant byte address 0x4 - core index']
  #allocation1 [shape = 'u32[144,128]{1,0:T(1,128)}', space=vmem, size = 0x12000, scoped, tag = 'internal scratch']
  %s0 = inlined_call_operand.vmem [shape: f32[32,128], index: 0, kind: input, shape index: {}]
  %s1 = inlined_call_operand.vmem [shape: bf16[128,384], index: 1, kind: input, shape index: {}]
  %s2 = inlined_call_operand.vmem [shape: f32[1,256], index: 2, kind: input, shape index: {}]
  %s3 = inlined_call_operand.vmem [shape: f32[32,128], index: 3, kind: output, shape index: {0}]
  %s4 = inlined_call_operand.vmem [shape: f32[32,256], index: 4, kind: output, shape index: {1}]
  %s5 = inlined_call_operand.vmem [shape: f32[2,128], index: 5, kind: output, shape index: {2}]
  %6 = xla_tuple %s3, %s4, %s5
  %s7 = sld [smem:[#allocation0]]
  $region65: #{bottleneck_forward.3} parent=0
    _
  %s9 = ssub.s32 1, %s7
  %s10 = scalar_select 0, %s9, %s7
  loop: start=0, step=1, limit=6
  $region2: #{bottleneck_forward.3} parent=0 // loop_pre_header
    _
  $region3: #{bottleneck_forward.3} parent=0 // loop_header
    %s12 = sphi 0, %s16
    %p13 = scmp.ge.s32.totalorder %s12, 6
    %s22 = sphi 0, %s24
    %s25 = sphi 0, %s22
    %s26 = sphi 0, %s25
    %s42 = sphi 0, %s26
    %s46 = sphi 0, %s46
    %s48 = sphi 0, %s46
    %s49 = sphi 0, %s48
    %s63 = sphi 0, %s49
    %s67 = sphi 0, %s67
    %s69 = sphi 0, %s67
    %s70 = sphi 0, %s69
    %s84 = sphi 0, %s70
    %s90 = sphi 0, %s92
    %s93 = sphi 0, %s90
    %s94 = sphi 0, %s93
    %s110 = sphi 0, %s94
    %s116 = sphi 0, %s118
    %s119 = sphi 0, %s116
    %s120 = sphi 0, %s119
    %s136 = sphi 0, %s120
    %s140 = sphi 0, %s140
    %s142 = sphi 0, %s140
    %s143 = sphi 0, %s142
    %s157 = sphi 0, %s143
  $region4: #{bottleneck_forward.3} parent=0 // loop_header_branch
    %15 = sbr.rel (%p13) target = $region8
  $region5: #{bottleneck_forward.3} parent=0 // loop_body
    %s17 = ssub.s32 %s12, 1
    %s18 = ssub.s32 %s12, 2
    %s19 = sadd.s32 %s12, 1
    %s20 = ssub.s32 %s12, %s19
    %p21 = scmp.eq.s32.totalorder %s20, 0
    %s23 = sadd.s32 %s22, 1
    %s24 = scalar_select %p21, %s22, %s23
    %p27 = pneg %p21
    %p28 = scmp.eq.s32.totalorder %s12, 3
    %p29 = por %p27, %p28
    %p30 = scmp.ne.s32.totalorder %s22, %s25
    %p31 = scmp.eq.s32.totalorder %s12, 0
    %p32 = por %p30, %p31
    %p33 = scmp.ne.s32.totalorder %s22, %s25
    %p34 = scmp.eq.s32.totalorder %s17, 3
    %p35 = por %p33, %p34
    %p36 = scmp.ne.s32.totalorder %s25, %s26
    %p37 = scmp.eq.s32.totalorder %s17, 0
    %p38 = por %p36, %p37
    %p39 = scmp.ne.s32.totalorder %s25, %s26
    %p40 = scmp.eq.s32.totalorder %s18, 3
    %p41 = por %p39, %p40
    %p43 = scmp.ne.s32.totalorder %s26, %s42
    %p44 = scmp.eq.s32.totalorder %s18, 0
    %p45 = por %p43, %p44
    %s47 = sadd.s32 %s46, 1
    %p50 = scmp.eq.s32.totalorder %s12, 3
    %p51 = scmp.ne.s32.totalorder %s46, %s48
    %p52 = scmp.eq.s32.totalorder %s12, 0
    %p53 = por %p51, %p52
    %p54 = scmp.ne.s32.totalorder %s46, %s48
    %p55 = scmp.eq.s32.totalorder %s17, 3
    %p56 = por %p54, %p55
    %p57 = scmp.ne.s32.totalorder %s48, %s49
    %p58 = scmp.eq.s32.totalorder %s17, 0
    %p59 = por %p57, %p58
    %p60 = scmp.ne.s32.totalorder %s48, %s49
    %p61 = scmp.eq.s32.totalorder %s18, 3
    %p62 = por %p60, %p61
    %p64 = scmp.ne.s32.totalorder %s49, %s63
    %p65 = scmp.eq.s32.totalorder %s18, 0
    %p66 = por %p64, %p65
    %s68 = sadd.s32 %s67, 1
    %p71 = scmp.eq.s32.totalorder %s12, 3
    %p72 = scmp.ne.s32.totalorder %s67, %s69
    %p73 = scmp.eq.s32.totalorder %s12, 0
    %p74 = por %p72, %p73
    %p75 = scmp.ne.s32.totalorder %s67, %s69
    %p76 = scmp.eq.s32.totalorder %s17, 3
    %p77 = por %p75, %p76
    %p78 = scmp.ne.s32.totalorder %s69, %s70
    %p79 = scmp.eq.s32.totalorder %s17, 0
    %p80 = por %p78, %p79
    %p81 = scmp.ne.s32.totalorder %s69, %s70
    %p82 = scmp.eq.s32.totalorder %s18, 3
    %p83 = por %p81, %p82
    %p85 = scmp.ne.s32.totalorder %s70, %s84
    %p86 = scmp.eq.s32.totalorder %s18, 0
    %p87 = por %p85, %p86
    %s88 = ssub.s32 %s12, %s19
    %p89 = scmp.eq.s32.totalorder %s88, 0
    %s91 = sadd.s32 %s90, 1
    %s92 = scalar_select %p89, %s90, %s91
    %p95 = pneg %p89
    %p96 = scmp.eq.s32.totalorder %s12, 3
    %p97 = por %p95, %p96
    %p98 = scmp.ne.s32.totalorder %s90, %s93
    %p99 = scmp.eq.s32.totalorder %s12, 0
    %p100 = por %p98, %p99
    %p101 = scmp.ne.s32.totalorder %s90, %s93
    %p102 = scmp.eq.s32.totalorder %s17, 3
    %p103 = por %p101, %p102
    %p104 = scmp.ne.s32.totalorder %s93, %s94
    %p105 = scmp.eq.s32.totalorder %s17, 0
    %p106 = por %p104, %p105
    %p107 = scmp.ne.s32.totalorder %s93, %s94
    %p108 = scmp.eq.s32.totalorder %s18, 3
    %p109 = por %p107, %p108
    %p111 = scmp.ne.s32.totalorder %s94, %s110
    %p112 = scmp.eq.s32.totalorder %s18, 0
    %p113 = por %p111, %p112
    %s114 = ssub.s32 %s12, %s19
    %p115 = scmp.eq.s32.totalorder %s114, 0
    %s117 = sadd.s32 %s116, 1
    %s118 = scalar_select %p115, %s116, %s117
    %p121 = pneg %p115
    %p122 = scmp.eq.s32.totalorder %s12, 3
    %p123 = por %p121, %p122
    %p124 = scmp.ne.s32.totalorder %s116, %s119
    %p125 = scmp.eq.s32.totalorder %s12, 0
    %p126 = por %p124, %p125
    %p127 = scmp.ne.s32.totalorder %s116, %s119
    %p128 = scmp.eq.s32.totalorder %s17, 3
    %p129 = por %p127, %p128
    %p130 = scmp.ne.s32.totalorder %s119, %s120
    %p131 = scmp.eq.s32.totalorder %s17, 0
    %p132 = por %p130, %p131
    %p133 = scmp.ne.s32.totalorder %s119, %s120
    %p134 = scmp.eq.s32.totalorder %s18, 3
    %p135 = por %p133, %p134
    %p137 = scmp.ne.s32.totalorder %s120, %s136
    %p138 = scmp.eq.s32.totalorder %s18, 0
    %p139 = por %p137, %p138
    %s141 = sadd.s32 %s140, 1
    %p144 = scmp.eq.s32.totalorder %s12, 3
    %p145 = scmp.ne.s32.totalorder %s140, %s142
    %p146 = scmp.eq.s32.totalorder %s12, 0
    %p147 = por %p145, %p146
    %p148 = scmp.ne.s32.totalorder %s140, %s142
    %p149 = scmp.eq.s32.totalorder %s17, 3
    %p150 = por %p148, %p149
    %p151 = scmp.ne.s32.totalorder %s142, %s143
    %p152 = scmp.eq.s32.totalorder %s17, 0
    %p153 = por %p151, %p152
    %p154 = scmp.ne.s32.totalorder %s142, %s143
    %p155 = scmp.eq.s32.totalorder %s18, 3
    %p156 = por %p154, %p155
    %p158 = scmp.ne.s32.totalorder %s143, %s157
    %p159 = scmp.eq.s32.totalorder %s18, 0
    %p160 = por %p158, %p159
    %p161 = scmp.le.s32.totalorder 1, %s12
    %p162 = scmp.lt.s32.totalorder %s12, 5
    %p163 = pnand %p161, %p162
    %p164 = pneg %p163
    // Predicated region
    $region9: #{bottleneck_forward.3} parent=5 // pred_check
      _
    $region10: #{bottleneck_forward.3} parent=5 // pred_check_branch
      %166 = sbr.rel (%p163) target = $region12
    $region11: #{bottleneck_forward.3} parent=5 // pred_region
      %s167 = ssub.s32 %s12, 1
      // Predicated region
      $region13: #{bottleneck_forward.3} parent=11 // pred_check
        %p168 = pneg %p59
      $region14: #{bottleneck_forward.3} parent=11 // pred_check_branch
        %170 = sbr.rel (%p168) target = $region16
      $region15: #{bottleneck_forward.3} parent=11 // pred_region
        _
      $region16: #{bottleneck_forward.3} parent=11 // pred_fallthru
        _
      // Predicated region
      $region17: #{bottleneck_forward.3} parent=11 // pred_check
        %p171 = pneg %p80
      $region18: #{bottleneck_forward.3} parent=11 // pred_check_branch
        %173 = sbr.rel (%p171) target = $region20
      $region19: #{bottleneck_forward.3} parent=11 // pred_region
        _
      $region20: #{bottleneck_forward.3} parent=11 // pred_fallthru
        _
    $region12: #{bottleneck_forward.3} parent=5 // pred_fallthru
      _
    %p174 = scmp.lt.s32.totalorder %s12, 4
    // Predicated region
    $region21: #{bottleneck_forward.3} parent=5 // pred_check
      %p175 = pneg %p174
    $region22: #{bottleneck_forward.3} parent=5 // pred_check_branch
      %177 = sbr.rel (%p175) target = $region24
    $region23: #{bottleneck_forward.3} parent=5 // pred_region
      // Predicated region
      $region25: #{bottleneck_forward.3} parent=23 // pred_check
        %p178 = pneg %p32
      $region26: #{bottleneck_forward.3} parent=23 // pred_check_branch
        %180 = sbr.rel (%p178) target = $region28
      $region27: #{bottleneck_forward.3} parent=23 // pred_region
        %p181 = scmp.lt.s32.totalorder %s12, 3
        %s182 = scalar_select %p181, %s12, 3
        %s183 = smul.addr %s182, 8
        %s184 = scalar_lea.vmem %s0, %s183
      $region28: #{bottleneck_forward.3} parent=23 // pred_fallthru
        _
    $region24: #{bottleneck_forward.3} parent=5 // pred_fallthru
      _
    %p185 = scmp.le.s32.totalorder 1, %s12
    %p186 = scmp.lt.s32.totalorder %s12, 5
    %p187 = pnand %p185, %p186
    %p188 = pneg %p187
    // Predicated region
    $region29: #{bottleneck_forward.3} parent=5 // pred_check
      _
    $region30: #{bottleneck_forward.3} parent=5 // pred_check_branch
      %190 = sbr.rel (%p187) target = $region32
    $region31: #{bottleneck_forward.3} parent=5 // pred_region
      %s191 = ssub.s32 %s12, 1
      %p192 = scmp.lt.s32.totalorder %s17, 3
      %s193 = scalar_select %p192, %s17, 3
      %s194 = smul.addr %s193, 8
      %s195 = scalar_lea.vmem %s0, %s194
      %p196 = pneg %p38
      %p197 = pneg %p35
      %p198 = pneg %p59
      %p199 = pneg %p56
      %p200 = pneg %p80
      %p201 = pneg %p77
      %p202 = pneg %p106
      %p203 = pneg %p103
      %p204 = scmp.lt.s32.totalorder %s17, 3
      %s205 = scalar_select %p204, %s17, 3
      %s206 = smul.addr %s205, 8
      %s207 = scalar_lea.vmem %s3, %s206
      %p208 = pneg %p132
      %p209 = pneg %p129
      %p210 = scmp.lt.s32.totalorder %s17, 3
      %s211 = scalar_select %p210, %s17, 3
      %s212 = smul.addr %s211, 2
      %s213 = smul.addr %s212, 8
      %s214 = scalar_lea.vmem %s4, %s213
      %p215 = pneg %p153
      %p216 = pneg %p150
      %p217 = scmp.lt.s32.totalorder %s17, 3
      %s218 = scalar_select %p217, %s17, 3
      %s219 = smul.addr %s218, 8
      %s220 = scalar_lea.vmem %s0, %s219
      %p221 = scmp.lt.s32.totalorder %s17, 3
      %s222 = scalar_select %p221, %s17, 3
      %s223 = smul.addr %s222, 8
      %s224 = scalar_lea.vmem %s3, %s223
      %p225 = scmp.lt.s32.totalorder %s17, 3
      %s226 = scalar_select %p225, %s17, 3
      %s227 = smul.addr %s226, 2
      %s228 = smul.addr %s227, 8
      %s229 = scalar_lea.vmem %s4, %s228
      %v231 = vld [vmem:[%s220] sm:$0xff]
      %v232 = vpack.c.bf16 %v231, %v231
      %v233 = vld [vmem:[%s1] sm:$0xff]
      %v234 = vld [vmem:[%s1 + $0x8] sm:$0xf]
      %v235 = vld [vmem:[%s1 + $0xc] sm:$0xff]
      %v236 = vld [vmem:[%s1 + $0x14] sm:$0xf]
      %v237 = vld [vmem:[%s1 + $0x18] sm:$0xff]
      %v238 = vld [vmem:[%s1 + $0x20] sm:$0xf]
      %v239 = vld [vmem:[%s1 + $0x24] sm:$0xff]
      %v240 = vld [vmem:[%s1 + $0x2c] sm:$0xf]
      %v241 = vld [vmem:[%s1 + $0x30] sm:$0xff]
      %v242 = vld [vmem:[%s1 + $0x38] sm:$0xf]
      %v243 = vld [vmem:[%s1 + $0x3c] sm:$0xff]
      %v244 = vld [vmem:[%s1 + $0x44] sm:$0xf]
      %v245 = vld [vmem:[%s1 + $0x48] sm:$0xff]
      %v246 = vld [vmem:[%s1 + $0x50] sm:$0xf]
      %v247 = vld [vmem:[%s1 + $0x54] sm:$0xff]
      %v248 = vld [vmem:[%s1 + $0x5c] sm:$0xf]
      %v249 = vld [vmem:[%s1 + $0x60] sm:$0xff]
      %v250 = vld [vmem:[%s1 + $0x68] sm:$0xf]
      %v251 = vld [vmem:[%s1 + $0x6c] sm:$0xff]
      %v252 = vld [vmem:[%s1 + $0x74] sm:$0xf]
      %v253 = vld [vmem:[%s1 + $0x78] sm:$0xff]
      %v254 = vld [vmem:[%s1 + $0x80] sm:$0xf]
      %v255 = vld [vmem:[%s1 + $0x84] sm:$0xff]
      %v256 = vld [vmem:[%s1 + $0x8c] sm:$0xf]
      %v257 = vld [vmem:[%s1 + $0x90] sm:$0xff]
      %v258 = vld [vmem:[%s1 + $0x98] sm:$0xf]
      %v259 = vld [vmem:[%s1 + $0x9c] sm:$0xff]
      %v260 = vld [vmem:[%s1 + $0xa4] sm:$0xf]
      %v261 = vld [vmem:[%s1 + $0xa8] sm:$0xff]
      %v262 = vld [vmem:[%s1 + $0xb0] sm:$0xf]
      %v263 = vld [vmem:[%s1 + $0xb4] sm:$0xff]
      %v264 = vld [vmem:[%s1 + $0xbc] sm:$0xf]
      %v297 = vunpack.c.l.b16 %v233
      %v298 = vunpack.c.h.b16 %v233
      %v299 = vunpack.c.l.b16 %v234
      %v300 = vunpack.c.l.b16 %v235
      %v301 = vunpack.c.h.b16 %v235
      %v302 = vunpack.c.l.b16 %v236
      %v303 = vunpack.c.l.b16 %v237
      %v304 = vunpack.c.h.b16 %v237
      %v305 = vunpack.c.l.b16 %v238
      %v306 = vunpack.c.l.b16 %v239
      %v307 = vunpack.c.h.b16 %v239
      %v308 = vunpack.c.l.b16 %v240
      %v309 = vunpack.c.l.b16 %v241
      %v310 = vunpack.c.h.b16 %v241
      %v311 = vunpack.c.l.b16 %v242
      %v312 = vunpack.c.l.b16 %v243
      %v313 = vunpack.c.h.b16 %v243
      %v314 = vunpack.c.l.b16 %v244
      %v315 = vunpack.c.l.b16 %v245
      %v316 = vunpack.c.h.b16 %v245
      %v317 = vunpack.c.l.b16 %v246
      %v318 = vunpack.c.l.b16 %v247
      %v319 = vunpack.c.h.b16 %v247
      %v320 = vunpack.c.l.b16 %v248
      %v321 = vunpack.c.l.b16 %v249
      %v322 = vunpack.c.h.b16 %v249
      %v323 = vunpack.c.l.b16 %v250
      %v324 = vunpack.c.l.b16 %v251
      %v325 = vunpack.c.h.b16 %v251
      %v326 = vunpack.c.l.b16 %v252
      %v327 = vunpack.c.l.b16 %v253
      %v328 = vunpack.c.h.b16 %v253
      %v329 = vunpack.c.l.b16 %v254
      %v330 = vunpack.c.l.b16 %v255
      %v331 = vunpack.c.h.b16 %v255
      %v332 = vunpack.c.l.b16 %v256
      %v333 = vunpack.c.l.b16 %v257
      %v334 = vunpack.c.h.b16 %v257
      %v335 = vunpack.c.l.b16 %v258
      %v336 = vunpack.c.l.b16 %v259
      %v337 = vunpack.c.h.b16 %v259
      %v338 = vunpack.c.l.b16 %v260
      %v339 = vunpack.c.l.b16 %v261
      %v340 = vunpack.c.h.b16 %v261
      %v341 = vunpack.c.l.b16 %v262
      %v342 = vunpack.c.l.b16 %v263
      %v343 = vunpack.c.h.b16 %v263
      %v344 = vunpack.c.l.b16 %v264
      %v345 = vpack.c.b16 %v300, %v297
      %v346 = vpack.c.b16 %v301, %v298
      %v347 = vpack.c.b16 %v302, %v299
      %v348 = vpack.c.b16 %v306, %v303
      %v349 = vpack.c.b16 %v307, %v304
      %v350 = vpack.c.b16 %v308, %v305
      %v351 = vpack.c.b16 %v312, %v309
      %v352 = vpack.c.b16 %v313, %v310
      %v353 = vpack.c.b16 %v314, %v311
      %v354 = vpack.c.b16 %v318, %v315
      %v355 = vpack.c.b16 %v319, %v316
      %v356 = vpack.c.b16 %v320, %v317
      %v357 = vpack.c.b16 %v324, %v321
      %v358 = vpack.c.b16 %v325, %v322
      %v359 = vpack.c.b16 %v326, %v323
      %v360 = vpack.c.b16 %v330, %v327
      %v361 = vpack.c.b16 %v331, %v328
      %v362 = vpack.c.b16 %v332, %v329
      %v363 = vpack.c.b16 %v336, %v333
      %v364 = vpack.c.b16 %v337, %v334
      %v365 = vpack.c.b16 %v338, %v335
      %v366 = vpack.c.b16 %v342, %v339
      %v367 = vpack.c.b16 %v343, %v340
      %v368 = vpack.c.b16 %v344, %v341
      %393 = vmatprep.subr.bf16.mxu0 %v367
      %394 = vmatpush1.bf16.msra.mxu0 %v366
      %395 = vmatprep.subr.bf16.mxu0 %v364
      %396 = vmatpush1.bf16.msra.mxu0 %v363
      %397 = vmatprep.subr.bf16.mxu0 %v361
      %398 = vmatpush1.bf16.msra.mxu0 %v360
      %399 = vmatprep.subr.bf16.mxu0 %v358
      %400 = vmatpush1.bf16.msra.mxu0 %v357
      %401 = vmatprep.subr.bf16.mxu0 %v355
      %402 = vmatpush1.bf16.msra.mxu0 %v354
      %403 = vmatprep.subr.bf16.mxu0 %v352
      %404 = vmatpush1.bf16.msra.mxu0 %v351
      %405 = vmatprep.subr.bf16.mxu0 %v349
      %406 = vmatpush1.bf16.msra.mxu0 %v348
      %407 = vmatprep.subr.bf16.mxu0 %v346
      %408 = vmatpush1.bf16.msra.mxu0 %v345
      %409 = vmatprep.subr.bf16.mxu0 0
      %410 = vmatpush2.bf16.msra.mxu0 0
      %411 = vmatprep.subr.bf16.mxu0 0
      %412 = vmatpush2.bf16.msra.mxu0 0
      %413 = vmatprep.subr.bf16.mxu0 0
      %414 = vmatpush2.bf16.msra.mxu0 0
      %415 = vmatprep.subr.bf16.mxu0 0
      %416 = vmatpush2.bf16.msra.mxu0 0
      %417 = vmatprep.subr.bf16.mxu0 0
      %418 = vmatpush2.bf16.msra.mxu0 0
      %419 = vmatprep.subr.bf16.mxu0 0
      %420 = vmatpush2.bf16.msra.mxu0 0
      %421 = vmatprep.subr.bf16.mxu0 0
      %422 = vmatpush2.bf16.msra.mxu0 0
      %423 = vmatprep.subr.bf16.mxu0 0
      %424 = vmatpush2.bf16.msra.mxu0 0
      %425 = vmatprep.mubr.bf16.mxu0 0
      %426 = vmatmul.mubr.bf16.gmra.mxu0 %v232
      %v427 = vpop.f32.mrf.mxu0
      %v428 = vadd.f32 0.0, %v427
      %v429 = vpop.f32.mrf.mxu0
      %v430 = vadd.f32 0.0, %v429
      %v431 = vpop.f32.mrf.mxu0
      %v432 = vpop.f32.mrf.mxu0
      %433 = vdwg.mxu0
      %434 = vmatprep.subr.bf16.mxu0 0
      %435 = vmatpush1.bf16.msra.mxu0 %v368
      %436 = vmatprep.subr.bf16.mxu0 0
      %437 = vmatpush1.bf16.msra.mxu0 %v365
      %438 = vmatprep.subr.bf16.mxu0 0
      %439 = vmatpush1.bf16.msra.mxu0 %v362
      %440 = vmatprep.subr.bf16.mxu0 0
      %441 = vmatpush1.bf16.msra.mxu0 %v359
      %442 = vmatprep.subr.bf16.mxu0 0
      %443 = vmatpush1.bf16.msra.mxu0 %v356
      %444 = vmatprep.subr.bf16.mxu0 0
      %445 = vmatpush1.bf16.msra.mxu0 %v353
      %446 = vmatprep.subr.bf16.mxu0 0
      %447 = vmatpush1.bf16.msra.mxu0 %v350
      %448 = vmatprep.subr.bf16.mxu0 0
      %449 = vmatpush1.bf16.msra.mxu0 %v347
      %450 = vmatprep.subr.bf16.mxu0 0
      %451 = vmatpush2.bf16.msra.mxu0 0
      %452 = vmatprep.subr.bf16.mxu0 0
      %453 = vmatpush2.bf16.msra.mxu0 0
      %454 = vmatprep.subr.bf16.mxu0 0
      %455 = vmatpush2.bf16.msra.mxu0 0
      %456 = vmatprep.subr.bf16.mxu0 0
      %457 = vmatpush2.bf16.msra.mxu0 0
      %458 = vmatprep.subr.bf16.mxu0 0
      %459 = vmatpush2.bf16.msra.mxu0 0
      %460 = vmatprep.subr.bf16.mxu0 0
      %461 = vmatpush2.bf16.msra.mxu0 0
      %462 = vmatprep.subr.bf16.mxu0 0
      %463 = vmatpush2.bf16.msra.mxu0 0
      %464 = vmatprep.subr.bf16.mxu0 0
      %465 = vmatpush2.bf16.msra.mxu0 0
      %466 = vmatprep.mubr.bf16.mxu0 0
      %467 = vmatmul.mubr.bf16.gmra.mxu0 %v232
      %v468 = vpop.f32.mrf.mxu0
      %v469 = vadd.f32 0.0, %v468
      %v470 = vpop.f32.mrf.mxu0
      %v471 = vpop.f32.mrf.mxu0
      %v472 = vpop.f32.mrf.mxu0
      %473 = vdwg.mxu0
      %474 = vst [vmem:[%s224] sm:$0xff] %v428
      %v475 = vld [vmem:[%s2] sm:$0x3]
      %v477 = vlaneseq
      %v478 = vshrl.u32 %v477, 7
      %v479 = vsub.s32 0, %v478
      %v480 = vrot.slane %v475, %v479
      %v481 = vlaneseq
      %v482 = vshrl.u32 %v481, 7
      %v483 = vsub.s32 1, %v482
      %v484 = vrot.slane %v475, %v483
      %v487 = vadd.f32 %v430, %v480
      %v488 = vadd.f32 %v469, %v484
      %489 = vst [vmem:[%s229] sm:$0xff] %v487
      %490 = vst [vmem:[%s229 + $0x8] sm:$0xff] %v488
      %v491 = vrot.slane %v428, 4
      %v492 = vadd.f32 %v428, %v491
      %v493 = vrot.slane %v492, 2
      %v494 = vadd.f32 %v492, %v493
      %v495 = vrot.slane %v494, 1
      %v496 = vadd.f32 %v494, %v495
      %v497 = vmul.f32 %v428, %v428
      %v498 = vrot.slane %v497, 4
      %v499 = vadd.f32 %v497, %v498
      %v500 = vrot.slane %v499, 2
      %v501 = vadd.f32 %v499, %v500
      %v502 = vrot.slane %v501, 1
      %v503 = vadd.f32 %v501, %v502
      %vm504 = vcmask 1040384
      %v505 = vsel %vm504, %v496, %v503
      %p506 = scmp.eq.s32.totalorder %s17, 0
      // Predicated region
      $region33: #{bottleneck_forward.3} parent=31 // pred_check
        %p507 = pneg %p506
      $region34: #{bottleneck_forward.3} parent=31 // pred_check_branch
        %509 = sbr.rel (%p507) target = $region36
      $region35: #{bottleneck_forward.3} parent=31 // pred_region
        %510 = vst [vmem:[%s5] sm:$0x3] 0.0
      $region36: #{bottleneck_forward.3} parent=31 // pred_fallthru
        _
      %v511 = vld [vmem:[%s5] sm:$0x3]
      %v512 = vadd.f32 %v511, %v505
      %513 = vst [vmem:[%s5] sm:$0x3] %v512
      %p514 = scmp.lt.s32.totalorder %s17, 3
      %s515 = scalar_select %p514, %s17, 3
      %s516 = smul.addr %s515, 8
      %s517 = scalar_lea.vmem %s3, %s516
      %p518 = scmp.lt.s32.totalorder %s17, 3
      %s519 = scalar_select %p518, %s17, 3
      %s520 = smul.addr %s519, 2
      %s521 = smul.addr %s520, 8
      %s522 = scalar_lea.vmem %s4, %s521
      // Predicated region
      $region37: #{bottleneck_forward.3} parent=31 // pred_check
        %p523 = pneg %p103
      $region38: #{bottleneck_forward.3} parent=31 // pred_check_branch
        %525 = sbr.rel (%p523) target = $region40
      $region39: #{bottleneck_forward.3} parent=31 // pred_region
        _
      $region40: #{bottleneck_forward.3} parent=31 // pred_fallthru
        _
      // Predicated region
      $region41: #{bottleneck_forward.3} parent=31 // pred_check
        %p526 = pneg %p129
      $region42: #{bottleneck_forward.3} parent=31 // pred_check_branch
        %528 = sbr.rel (%p526) target = $region44
      $region43: #{bottleneck_forward.3} parent=31 // pred_region
        _
      $region44: #{bottleneck_forward.3} parent=31 // pred_fallthru
        _
      // Predicated region
      $region45: #{bottleneck_forward.3} parent=31 // pred_check
        %p529 = pneg %p150
      $region46: #{bottleneck_forward.3} parent=31 // pred_check_branch
        %531 = sbr.rel (%p529) target = $region48
      $region47: #{bottleneck_forward.3} parent=31 // pred_region
        _
      $region48: #{bottleneck_forward.3} parent=31 // pred_fallthru
        _
      // Predicated region
      $region49: #{bottleneck_forward.3} parent=31 // pred_check
        %p532 = pneg %p150
      $region50: #{bottleneck_forward.3} parent=31 // pred_check_branch
        %534 = sbr.rel (%p532) target = $region52
      $region51: #{bottleneck_forward.3} parent=31 // pred_region
        _
      $region52: #{bottleneck_forward.3} parent=31 // pred_fallthru
        _
    $region32: #{bottleneck_forward.3} parent=5 // pred_fallthru
      _
    %p535 = scmp.le.s32.totalorder 2, %s12
    // Predicated region
    $region53: #{bottleneck_forward.3} parent=5 // pred_check
      %p536 = pneg %p535
    $region54: #{bottleneck_forward.3} parent=5 // pred_check_branch
      %538 = sbr.rel (%p536) target = $region56
    $region55: #{bottleneck_forward.3} parent=5 // pred_region
      %s539 = ssub.s32 %s12, 2
      // Predicated region
      $region57: #{bottleneck_forward.3} parent=55 // pred_check
        %p540 = pneg %p109
      $region58: #{bottleneck_forward.3} parent=55 // pred_check_branch
        %542 = sbr.rel (%p540) target = $region60
      $region59: #{bottleneck_forward.3} parent=55 // pred_region
        %p543 = scmp.lt.s32.totalorder %s18, 3
        %s544 = scalar_select %p543, %s18, 3
        %s545 = smul.addr %s544, 8
        %s546 = scalar_lea.vmem %s3, %s545
      $region60: #{bottleneck_forward.3} parent=55 // pred_fallthru
        _
      // Predicated region
      $region61: #{bottleneck_forward.3} parent=55 // pred_check
        %p547 = pneg %p135
      $region62: #{bottleneck_forward.3} parent=55 // pred_check_branch
        %549 = sbr.rel (%p547) target = $region64
      $region63: #{bottleneck_forward.3} parent=55 // pred_region
        %p550 = scmp.lt.s32.totalorder %s18, 3
        %s551 = scalar_select %p550, %s18, 3
        %s552 = smul.addr %s551, 2
        %s553 = smul.addr %s552, 8
        %s554 = scalar_lea.vmem %s4, %s553
      $region64: #{bottleneck_forward.3} parent=55 // pred_fallthru
        _
    $region56: #{bottleneck_forward.3} parent=5 // pred_fallthru
      _
  $region6: #{bottleneck_forward.3} parent=0 // loop_footer
    %s16 = sadd.s32 1, %s12
  $region7: #{bottleneck_forward.3} parent=0 // loop_footer_branch
    %11 = sbr.rel target = $region3
  $region8: #{bottleneck_forward.3} parent=0 // loop_exit
    _

</llo_original>
